<compile_context>
chip_gen: v5e
topology: v5e:2x2
jax: 0.10.0
libtpu: 0.0.40
codegen_flags: <defaults>
</compile_context>

<pallas_src>
import functools

import jax
import jax.numpy as jnp
from jax.experimental import pallas as pl
from jax.experimental.pallas import tpu as pltpu


def _semantic_attention_kernel(
    x_ref,        # (Bb, N, C)   f32, VMEM
    wcat_ref,     # (C, 2K + C)  mxu_dtype, VMEM  (fused [Wq | Wk | Wv@Wr])
    bcat_ref,     # (1, 2K + C)  f32, VMEM        (fused [bq | bk | bv@Wr + br])
    gamma_ref,    # (1,)         f32, SMEM
    seg_t_ref,    # out: (Bb, K, N)
    feat_ref,     # out: (Bb, N, C)
):
    Bb, N, C = x_ref.shape
    K = seg_t_ref.shape[1]
    mxu_dtype = wcat_ref.dtype   # f32 or bf16; accumulation is always f32

    x = x_ref[...].astype(jnp.float32)                       # (Bb, N, C)
    x2 = x.reshape(Bb * N, C)

    # One fused projection matmul: [q | k | v], where v already folds mlp_res.
    proj = jnp.dot(
        x2.astype(mxu_dtype), wcat_ref[...],
        preferred_element_type=jnp.float32,
    ) + bcat_ref[...]                                         # (Bb*N, 2K+C) f32

    q = proj[:, :K].reshape(Bb, N, K)
    k = proj[:, K:2 * K].reshape(Bb, N, K)
    v = proj[:, 2 * K:].reshape(Bb, N, C)

    # seg_score = softmax(q @ k^T, axis=-1); transpose folds into the contraction.
    s = jnp.einsum(
        "bnk,bmk->bnm", q.astype(mxu_dtype), k.astype(mxu_dtype),
        preferred_element_type=jnp.float32,
    )                                                         # (Bb, N, N) f32
    s_max = jnp.max(s, axis=-1, keepdims=True)
    p = jnp.exp(s - s_max)
    denom = jnp.sum(p, axis=-1, keepdims=True)
    attn = p * pl.reciprocal(denom, approx=True)              # EUP vrcp slot

    # feats = attn @ v   (mlp_res already folded into v).
    f = jnp.einsum(
        "bnm,bmc->bnc", attn.astype(mxu_dtype), v.astype(mxu_dtype),
        preferred_element_type=jnp.float32,
    )                                                         # (Bb, N, C) f32
    # TODO(synk): proj_drop (Dropout p=0.1) is identity in eval mode; training-mode
    # stochastic dropout is not implemented here.

    gamma = gamma_ref[0]
    out = gamma * f + x

    # Lane-dense seg store: last dim = N (multiple of 128); transposed back outside.
    seg_t_ref[...] = jnp.transpose(q, (0, 2, 1)).astype(seg_t_ref.dtype)
    feat_ref[...] = out.astype(feat_ref.dtype)


def _pick_block_b(B, max_block=8):
    """Largest divisor of B that is <= max_block while keeping >= 2 grid steps
    (so the 'parallel' batch axis can shard across v7x's two TensorCores)."""
    limit = min(max_block, max(1, B // 2)) if B > 1 else 1
    best = 1
    for cand in range(1, limit + 1):
        if B % cand == 0:
            best = cand
    return best


def semantic_attention(x, params, *, block_b=None, mxu_dtype=jnp.float32):
    """SemanticAttention forward (eval mode; proj_drop is identity).

    x: (B, N, C) float32.
    params: dict of pre-transposed (in, out) weights/biases (see init_params).
    mxu_dtype: operand dtype fed to the MXU (jnp.bfloat16 recommended on v6e/v7x);
               softmax math and matmul accumulation stay float32.
    Returns (seg_map (B, N, K), feat_map (B, N, C)).
    """
    B, N, C = x.shape
    K = params["wq"].shape[1]
    P = 2 * K + C

    # Fold mlp_res into mlp_v (exact: softmax rows sum to 1, so the constant bias
    # commutes with `attn @`):  (attn @ (xWv + bv)) Wr + br == attn @ (x(WvWr) + (bvWr + br))
    w_vr = params["wv"] @ params["wr"]
    b_vr = params["bv"] @ params["wr"] + params["br"]

    w_cat = jnp.concatenate([params["wq"], params["wk"], w_vr], axis=1).astype(mxu_dtype)  # (C, P)
    b_cat = jnp.concatenate([params["bq"], params["bk"], b_vr]).reshape(1, P).astype(jnp.float32)
    gamma = params["gamma"].reshape(1).astype(jnp.float32)

    if block_b is None:
        block_b = _pick_block_b(B)
    assert B % block_b == 0, (B, block_b)
    grid = (B // block_b,)

    seg_t, feat_map = pl.pallas_call(
        _semantic_attention_kernel,
        out_shape=(
            jax.ShapeDtypeStruct((B, K, N), x.dtype),   # lane-dense seg (transposed)
            jax.ShapeDtypeStruct((B, N, C), x.dtype),
        ),
        grid_spec=pltpu.PrefetchScalarGridSpec(
            num_scalar_prefetch=0,
            grid=grid,
            in_specs=[
                pl.BlockSpec((block_b, N, C), lambda b: (b, 0, 0)),      # x
                pl.BlockSpec((C, P), lambda b: (0, 0)),                  # fused weights
                pl.BlockSpec((1, P), lambda b: (0, 0)),                  # fused biases
                pl.BlockSpec(memory_space=pltpu.MemorySpace.SMEM),       # gamma (scalar)
            ],
            out_specs=[
                pl.BlockSpec((block_b, K, N), lambda b: (b, 0, 0)),      # seg (lane-dense)
                pl.BlockSpec((block_b, N, C), lambda b: (b, 0, 0)),      # feat
            ],
        ),
        compiler_params=pltpu.CompilerParams(
            dimension_semantics=("parallel",),
            vmem_limit_bytes=32 * 1024 * 1024,   # far above need; safe on v5e/v6e/v7x
        ),
    )(x, w_cat, b_cat, gamma)

    seg_map = jnp.transpose(seg_t, (0, 2, 1))   # back to (B, N, K)
    return seg_map, feat_map


def init_params(key, emb_dim, n_cls):
    """Deterministic init mirroring the module's _init_weight():
    kaiming_normal_ (fan_in, gain=sqrt(2)) for q/k/v weights, zero biases,
    zero mlp_res weight/bias, gamma = 0.  Weights stored as (in, out)."""
    kq, kk, kv = jax.random.split(key, 3)
    std = (2.0 / emb_dim) ** 0.5
    return {
        "wq": jax.random.normal(kq, (emb_dim, n_cls), jnp.float32) * std,
        "bq": jnp.zeros((n_cls,), jnp.float32),
        "wk": jax.random.normal(kk, (emb_dim, n_cls), jnp.float32) * std,
        "bk": jnp.zeros((n_cls,), jnp.float32),
        "wv": jax.random.normal(kv, (emb_dim, emb_dim), jnp.float32) * std,
        "bv": jnp.zeros((emb_dim,), jnp.float32),
        "wr": jnp.zeros((emb_dim, emb_dim), jnp.float32),
        "br": jnp.zeros((emb_dim,), jnp.float32),
        "gamma": jnp.zeros((1,), jnp.float32),
    }


def _reference(x, p):
    """Plain-JAX reference of the PyTorch forward (eval mode), unfused."""
    q = x @ p["wq"] + p["bq"]
    k = x @ p["wk"] + p["bk"]
    v = x @ p["wv"] + p["bv"]
    s = jax.nn.softmax(jnp.einsum("bnk,bmk->bnm", q, k), axis=-1)
    f = jnp.einsum("bnm,bmc->bnc", s, v)
    f = f @ p["wr"] + p["br"]
    return q, p["gamma"][0] * f + x


if __name__ == "__main__":
    B, N, C, K = 4, 128, 32, 8   # batch, tokens, emb_dim, n_cls

    key = jax.random.PRNGKey(0)
    kx, kp, kr = jax.random.split(key, 3)
    x = jax.random.normal(kx, (B, N, C), jnp.float32)
    params = init_params(kp, C, K)

    # The module's faithful init has wr == 0, gamma == 0 and zero biases, which makes
    # feat_map == x exactly and leaves the attention/value/residual path untested.
    # Perturb them here so the self-test exercises the whole forward numerically.
    krw, krb, kbq, kbk, kbv = jax.random.split(kr, 5)
    params["wr"] = jax.random.normal(krw, (C, C), jnp.float32) * 0.25
    params["br"] = jax.random.normal(krb, (C,), jnp.float32) * 0.1
    params["bq"] = jax.random.normal(kbq, (K,), jnp.float32) * 0.1
    params["bk"] = jax.random.normal(kbk, (K,), jnp.float32) * 0.1
    params["bv"] = jax.random.normal(kbv, (C,), jnp.float32) * 0.1
    params["gamma"] = jnp.array([0.5], jnp.float32)

    seg_ref, feat_ref = _reference(x, params)

    # f32 MXU path (default; block_b=2 -> grid of 2 "parallel" steps).
    # Tolerance covers the ~2^-12 relative error of the EUP approximate reciprocal
    # plus f32 matmul accumulation-order differences vs the unfused XLA reference.
    seg_map, feat_map = jax.jit(semantic_attention)(x, params)
    jax.block_until_ready((seg_map, feat_map))
    assert seg_map.shape == (B, N, K) and feat_map.shape == (B, N, C)
    assert jnp.allclose(seg_map, seg_ref, atol=5e-3, rtol=5e-3)
    assert jnp.allclose(feat_map, feat_ref, atol=5e-3, rtol=5e-3)

    # bf16-operand MXU path (recommended on v6e/v7x): loose sanity check against the
    # f32 reference; the gap is bf16 operand rounding propagated through the softmax.
    bf16_fwd = jax.jit(functools.partial(semantic_attention, mxu_dtype=jnp.bfloat16))
    seg_bf16, feat_bf16 = bf16_fwd(x, params)
    jax.block_until_ready((seg_bf16, feat_bf16))
    assert jnp.allclose(seg_bf16, seg_ref, atol=0.25, rtol=0.1)
    assert jnp.allclose(feat_bf16, feat_ref, atol=0.25, rtol=0.1)

    print("KERNEL_OK")
</pallas_src>

<mosaic_0001>
module attributes {stable_mosaic.version = 11 : i64} {
  func.func @_semantic_attention_kernel(%arg0: i32, %arg1: memref<2x128x32xf32, #tpu.memory_space<vmem>>, %arg2: memref<32x48xf32, #tpu.memory_space<vmem>>, %arg3: memref<1x48xf32, #tpu.memory_space<vmem>>, %arg4: memref<1xf32, #tpu.memory_space<smem>>, %arg5: memref<2x8x128xf32, #tpu.memory_space<vmem>>, %arg6: memref<2x128x32xf32, #tpu.memory_space<vmem>>) attributes {dimension_semantics = [#tpu.dimension_semantics<parallel>], iteration_bounds = array<i64: 2>, scalar_prefetch = 0 : i64, scratch_operands = 0 : i64, tpu.core_type = #tpu.core_type<tc>, window_params = [{transform_indices = @transform_0, window_bounds = array<i64: 2, 128, 32>}, {pipeline_mode = #tpu.pipeline_mode<synchronous>, transform_indices = @transform_1, window_bounds = array<i64: 32, 48>}, {pipeline_mode = #tpu.pipeline_mode<synchronous>, transform_indices = @transform_2, window_bounds = array<i64: 1, 48>}, {transform_indices = @transform_3, window_bounds = array<i64: 1>}, {transform_indices = @transform_4, window_bounds = array<i64: 2, 8, 128>}, {transform_indices = @transform_5, window_bounds = array<i64: 2, 128, 32>}]} {
    %c0 = arith.constant 0 : index
    %c0_0 = arith.constant 0 : index
    %c0_1 = arith.constant 0 : index
    %0 = vector.load %arg1[%c0, %c0_0, %c0_1] : memref<2x128x32xf32, #tpu.memory_space<vmem>>, vector<2x128x32xf32>
    %1 = vector.shape_cast %0 : vector<2x128x32xf32> to vector<256x32xf32>
    %c0_2 = arith.constant 0 : index
    %c0_3 = arith.constant 0 : index
    %2 = vector.load %arg2[%c0_2, %c0_3] : memref<32x48xf32, #tpu.memory_space<vmem>>, vector<32x48xf32>
    %cst = arith.constant dense<0.000000e+00> : vector<256x48xf32>
    %3 = tpu.matmul %1, %2, %cst {dimension_numbers = #tpu.dot_dimension_numbers<[1], [0], [0], [1], [0, 0, 1, 1], [], []>} : vector<256x32xf32>, vector<32x48xf32>, vector<256x48xf32> -> vector<256x48xf32>
    %c0_4 = arith.constant 0 : index
    %c0_5 = arith.constant 0 : index
    %4 = vector.load %arg3[%c0_4, %c0_5] : memref<1x48xf32, #tpu.memory_space<vmem>>, vector<1x48xf32>
    %5 = vector.broadcast %4 : vector<1x48xf32> to vector<256x48xf32>
    %6 = arith.addf %3, %5 : vector<256x48xf32>
    %7 = vector.extract_strided_slice %6 {offsets = [0, 0], sizes = [256, 8], strides = [1, 1]} : vector<256x48xf32> to vector<256x8xf32>
    %8 = vector.shape_cast %7 : vector<256x8xf32> to vector<2x128x8xf32>
    %9 = vector.extract_strided_slice %6 {offsets = [0, 8], sizes = [256, 8], strides = [1, 1]} : vector<256x48xf32> to vector<256x8xf32>
    %10 = vector.shape_cast %9 : vector<256x8xf32> to vector<2x128x8xf32>
    %11 = vector.extract_strided_slice %6 {offsets = [0, 16], sizes = [256, 32], strides = [1, 1]} : vector<256x48xf32> to vector<256x32xf32>
    %12 = vector.shape_cast %11 : vector<256x32xf32> to vector<2x128x32xf32>
    "tpu.trace_start"() <{level = 10 : i32, message = "bnk,bmk->bnm"}> : () -> ()
    %cst_6 = arith.constant dense<0.000000e+00> : vector<2x128x128xf32>
    %13 = tpu.matmul %8, %10, %cst_6 {dimension_numbers = #tpu.dot_dimension_numbers<[2], [2], [1], [1], [0, 0, 0, 1, 1, 1], [0], [0]>} : vector<2x128x8xf32>, vector<2x128x8xf32>, vector<2x128x128xf32> -> vector<2x128x128xf32>
    "tpu.trace_stop"() : () -> ()
    %cst_7 = arith.constant dense<0xFF800000> : vector<2x128xf32>
    %14 = vector.multi_reduction <maximumf>, %13, %cst_7 [2] : vector<2x128x128xf32> to vector<2x128xf32>
    %15 = vector.shape_cast %14 : vector<2x128xf32> to vector<2x128x1xf32>
    %16 = vector.broadcast %15 : vector<2x128x1xf32> to vector<2x128x128xf32>
    %17 = arith.subf %13, %16 : vector<2x128x128xf32>
    %18 = math.exp %17 : vector<2x128x128xf32>
    %cst_8 = arith.constant dense<0.000000e+00> : vector<2x128xf32>
    %19 = vector.multi_reduction <add>, %18, %cst_8 [2] : vector<2x128x128xf32> to vector<2x128xf32>
    %20 = vector.shape_cast %19 : vector<2x128xf32> to vector<2x128x1xf32>
    %21 = tpu.reciprocal %20 {approx = true} : vector<2x128x1xf32> -> vector<2x128x1xf32>
    %22 = vector.broadcast %21 : vector<2x128x1xf32> to vector<2x128x128xf32>
    %23 = arith.mulf %18, %22 : vector<2x128x128xf32>
    "tpu.trace_start"() <{level = 10 : i32, message = "bnm,bmc->bnc"}> : () -> ()
    %cst_9 = arith.constant dense<0.000000e+00> : vector<2x128x32xf32>
    %24 = tpu.matmul %23, %12, %cst_9 {dimension_numbers = #tpu.dot_dimension_numbers<[2], [1], [1], [2], [0, 0, 0, 1, 1, 2], [0], [0]>} : vector<2x128x128xf32>, vector<2x128x32xf32>, vector<2x128x32xf32> -> vector<2x128x32xf32>
    "tpu.trace_stop"() : () -> ()
    %c0_10 = arith.constant 0 : index
    %25 = memref.load %arg4[%c0_10] : memref<1xf32, #tpu.memory_space<smem>>
    %26 = vector.broadcast %25 : f32 to vector<2x128x32xf32>
    %27 = arith.mulf %26, %24 : vector<2x128x32xf32>
    %28 = arith.addf %27, %0 : vector<2x128x32xf32>
    %29 = tpu.transpose %8, [0, 2, 1] : vector<2x128x8xf32> -> vector<2x8x128xf32>
    %c0_11 = arith.constant 0 : index
    %c0_12 = arith.constant 0 : index
    %c0_13 = arith.constant 0 : index
    %30 = vector.load %arg5[%c0_11, %c0_12, %c0_13] : memref<2x8x128xf32, #tpu.memory_space<vmem>>, vector<2x8x128xf32>
    tpu.vector_store %arg5[%c0_11, %c0_12, %c0_13], %29 {strides = array<i32>} : memref<2x8x128xf32, #tpu.memory_space<vmem>>, vector<2x8x128xf32>,
    %c0_14 = arith.constant 0 : index
    %c0_15 = arith.constant 0 : index
    %c0_16 = arith.constant 0 : index
    %31 = vector.load %arg6[%c0_14, %c0_15, %c0_16] : memref<2x128x32xf32, #tpu.memory_space<vmem>>, vector<2x128x32xf32>
    tpu.vector_store %arg6[%c0_14, %c0_15, %c0_16], %28 {strides = array<i32>} : memref<2x128x32xf32, #tpu.memory_space<vmem>>, vector<2x128x32xf32>,
    return
  }
  func.func @transform_0(%arg0: i32) -> (i32, i32, i32) {
    %c0_i32 = arith.constant 0 : i32
    %c0_i32_0 = arith.constant 0 : i32
    %c0_i32_1 = arith.constant 0 : i32
    return %arg0, %c0_i32, %c0_i32_0 : i32, i32, i32
  }
  func.func @transform_1(%arg0: i32) -> (i32, i32) {
    %c0_i32 = arith.constant 0 : i32
    %c0_i32_0 = arith.constant 0 : i32
    %c0_i32_1 = arith.constant 0 : i32
    return %c0_i32, %c0_i32_0 : i32, i32
  }
  func.func @transform_2(%arg0: i32) -> (i32, i32) {
    %c0_i32 = arith.constant 0 : i32
    %c0_i32_0 = arith.constant 0 : i32
    %c0_i32_1 = arith.constant 0 : i32
    return %c0_i32, %c0_i32_0 : i32, i32
  }
  func.func @transform_3(%arg0: i32) -> i32 {
    %c0_i32 = arith.constant 0 : i32
    %c0_i32_0 = arith.constant 0 : i32
    return %c0_i32 : i32
  }
  func.func @transform_4(%arg0: i32) -> (i32, i32, i32) {
    %c0_i32 = arith.constant 0 : i32
    %c0_i32_0 = arith.constant 0 : i32
    %c0_i32_1 = arith.constant 0 : i32
    return %arg0, %c0_i32, %c0_i32_0 : i32, i32, i32
  }
  func.func @transform_5(%arg0: i32) -> (i32, i32, i32) {
    %c0_i32 = arith.constant 0 : i32
    %c0_i32_0 = arith.constant 0 : i32
    %c0_i32_1 = arith.constant 0 : i32
    return %arg0, %c0_i32, %c0_i32_0 : i32, i32, i32
  }
}

</mosaic_0001>

<llo_original>
// kernel: semantic_attention.1
$region0: #{semantic_attention.1}
  #allocation0 [shape = 'u32[]', space=smem, size = 0x4, offset = 0x4, fixed_abs, tag = 'smem constant byte address 0x4 - core index']
  #allocation1 [shape = 'u32[72,128]{1,0:T(1,128)}', space=vmem, size = 0x9000, scoped, tag = 'internal scratch']
  #allocation2 [shape = 'f32[1]{0:T(128)S(6)}', space=smem, size = 0x200, scoped, tag = 'scoped memory for semantic_attention.1']
  %s0 = inlined_call_operand.vmem [shape: f32[4,128,32], index: 0, kind: input, shape index: {}]
  %s1 = inlined_call_operand.vmem [shape: f32[32,48], index: 1, kind: input, shape index: {}]
  %s2 = inlined_call_operand.vmem [shape: f32[1,48], index: 2, kind: input, shape index: {}]
  %s3 = inlined_call_operand.<no memory space> [shape: f32[1], index: 3, kind: input, shape index: {}]
  %s4 = inlined_call_operand.hbm [shape: f32[4,8,128], index: 4, kind: output, shape index: {0}]
  %s5 = inlined_call_operand.vmem [shape: f32[4,128,32], index: 5, kind: output, shape index: {1}]
  %6 = xla_tuple %s4, %s5
  %s7 = sld [smem:[#allocation0]]
  $region57: #{semantic_attention.1} parent=0
    _
  %s9 = ssub.s32 1, %s7
  %s10 = scalar_select 0, %s9, %s7
  %11 = sst [smem:[#allocation2]] %s3
  $region1: #{semantic_attention.1} parent=0
    #allocation3 [shape = 'u8[16384]{0}', space=vmem, size = 0x4000, scoped, tag = 'output window, operand 0']
    #allocation4 [shape = 's32[2]{0}', space=sflag, size = 0x8, scoped, tag = 'scoped memory for semantic_attention.1']
    %12 = vsyncpa [#allocation4], 0
    %s13 = scalar_lea.sflag [#allocation4], 1
    %14 = vsyncpa %s13, 0
    loop: start=0, step=1, limit=4
    $region2: #{semantic_attention.1} parent=1 // loop_pre_header
      _
    $region3: #{semantic_attention.1} parent=1 // loop_header
      %s16 = sphi 0, %s20
      %p17 = scmp.ge.s32.totalorder %s16, 4
      %s26 = sphi 0, %s28
      %s29 = sphi 0, %s26
      %s30 = sphi 0, %s29
      %s46 = sphi 0, %s30
      %s50 = sphi 0, %s50
      %s52 = sphi 0, %s50
      %s53 = sphi 0, %s52
      %s67 = sphi 0, %s53
      %s71 = sphi 0, %s71
      %s73 = sphi 0, %s71
      %s74 = sphi 0, %s73
      %s88 = sphi 0, %s74
      %s92 = sphi 0, %s92
      %s94 = sphi 0, %s92
      %s95 = sphi 0, %s94
      %s109 = sphi 0, %s95
      %s115 = sphi 0, %s117
      %s118 = sphi 0, %s115
      %s119 = sphi 0, %s118
      %s135 = sphi 0, %s119
      %s141 = sphi 0, %s143
      %s144 = sphi 0, %s141
      %s145 = sphi 0, %s144
      %s161 = sphi 0, %s145
    $region4: #{semantic_attention.1} parent=1 // loop_header_branch
      %19 = sbr.rel (%p17) target = $region8
    $region5: #{semantic_attention.1} parent=1 // loop_body
      %s21 = ssub.s32 %s16, 1
      %s22 = ssub.s32 %s16, 2
      %s23 = sadd.s32 %s16, 1
      %s24 = ssub.s32 %s16, %s23
      %p25 = scmp.eq.s32.totalorder %s24, 0
      %s27 = sadd.s32 %s26, 1
      %s28 = scalar_select %p25, %s26, %s27
      %p31 = pneg %p25
      %p32 = scmp.eq.s32.totalorder %s16, 1
      %p33 = por %p31, %p32
      %p34 = scmp.ne.s32.totalorder %s26, %s29
      %p35 = scmp.eq.s32.totalorder %s16, 0
      %p36 = por %p34, %p35
      %p37 = scmp.ne.s32.totalorder %s26, %s29
      %p38 = scmp.eq.s32.totalorder %s21, 1
      %p39 = por %p37, %p38
      %p40 = scmp.ne.s32.totalorder %s29, %s30
      %p41 = scmp.eq.s32.totalorder %s21, 0
      %p42 = por %p40, %p41
      %p43 = scmp.ne.s32.totalorder %s29, %s30
      %p44 = scmp.eq.s32.totalorder %s22, 1
      %p45 = por %p43, %p44
      %p47 = scmp.ne.s32.totalorder %s30, %s46
      %p48 = scmp.eq.s32.totalorder %s22, 0
      %p49 = por %p47, %p48
      %s51 = sadd.s32 %s50, 1
      %p54 = scmp.eq.s32.totalorder %s16, 1
      %p55 = scmp.ne.s32.totalorder %s50, %s52
      %p56 = scmp.eq.s32.totalorder %s16, 0
      %p57 = por %p55, %p56
      %p58 = scmp.ne.s32.totalorder %s50, %s52
      %p59 = scmp.eq.s32.totalorder %s21, 1
      %p60 = por %p58, %p59
      %p61 = scmp.ne.s32.totalorder %s52, %s53
      %p62 = scmp.eq.s32.totalorder %s21, 0
      %p63 = por %p61, %p62
      %p64 = scmp.ne.s32.totalorder %s52, %s53
      %p65 = scmp.eq.s32.totalorder %s22, 1
      %p66 = por %p64, %p65
      %p68 = scmp.ne.s32.totalorder %s53, %s67
      %p69 = scmp.eq.s32.totalorder %s22, 0
      %p70 = por %p68, %p69
      %s72 = sadd.s32 %s71, 1
      %p75 = scmp.eq.s32.totalorder %s16, 1
      %p76 = scmp.ne.s32.totalorder %s71, %s73
      %p77 = scmp.eq.s32.totalorder %s16, 0
      %p78 = por %p76, %p77
      %p79 = scmp.ne.s32.totalorder %s71, %s73
      %p80 = scmp.eq.s32.totalorder %s21, 1
      %p81 = por %p79, %p80
      %p82 = scmp.ne.s32.totalorder %s73, %s74
      %p83 = scmp.eq.s32.totalorder %s21, 0
      %p84 = por %p82, %p83
      %p85 = scmp.ne.s32.totalorder %s73, %s74
      %p86 = scmp.eq.s32.totalorder %s22, 1
      %p87 = por %p85, %p86
      %p89 = scmp.ne.s32.totalorder %s74, %s88
      %p90 = scmp.eq.s32.totalorder %s22, 0
      %p91 = por %p89, %p90
      %s93 = sadd.s32 %s92, 1
      %p96 = scmp.eq.s32.totalorder %s16, 1
      %p97 = scmp.ne.s32.totalorder %s92, %s94
      %p98 = scmp.eq.s32.totalorder %s16, 0
      %p99 = por %p97, %p98
      %p100 = scmp.ne.s32.totalorder %s92, %s94
      %p101 = scmp.eq.s32.totalorder %s21, 1
      %p102 = por %p100, %p101
      %p103 = scmp.ne.s32.totalorder %s94, %s95
      %p104 = scmp.eq.s32.totalorder %s21, 0
      %p105 = por %p103, %p104
      %p106 = scmp.ne.s32.totalorder %s94, %s95
      %p107 = scmp.eq.s32.totalorder %s22, 1
      %p108 = por %p106, %p107
      %p110 = scmp.ne.s32.totalorder %s95, %s109
      %p111 = scmp.eq.s32.totalorder %s22, 0
      %p112 = por %p110, %p111
      %s113 = ssub.s32 %s16, %s23
      %p114 = scmp.eq.s32.totalorder %s113, 0
      %s116 = sadd.s32 %s115, 1
      %s117 = scalar_select %p114, %s115, %s116
      %p120 = pneg %p114
      %p121 = scmp.eq.s32.totalorder %s16, 1
      %p122 = por %p120, %p121
      %p123 = scmp.ne.s32.totalorder %s115, %s118
      %p124 = scmp.eq.s32.totalorder %s16, 0
      %p125 = por %p123, %p124
      %p126 = scmp.ne.s32.totalorder %s115, %s118
      %p127 = scmp.eq.s32.totalorder %s21, 1
      %p128 = por %p126, %p127
      %p129 = scmp.ne.s32.totalorder %s118, %s119
      %p130 = scmp.eq.s32.totalorder %s21, 0
      %p131 = por %p129, %p130
      %p132 = scmp.ne.s32.totalorder %s118, %s119
      %p133 = scmp.eq.s32.totalorder %s22, 1
      %p134 = por %p132, %p133
      %p136 = scmp.ne.s32.totalorder %s119, %s135
      %p137 = scmp.eq.s32.totalorder %s22, 0
      %p138 = por %p136, %p137
      %s139 = ssub.s32 %s16, %s23
      %p140 = scmp.eq.s32.totalorder %s139, 0
      %s142 = sadd.s32 %s141, 1
      %s143 = scalar_select %p140, %s141, %s142
      %p146 = pneg %p140
      %p147 = scmp.eq.s32.totalorder %s16, 1
      %p148 = por %p146, %p147
      %p149 = scmp.ne.s32.totalorder %s141, %s144
      %p150 = scmp.eq.s32.totalorder %s16, 0
      %p151 = por %p149, %p150
      %p152 = scmp.ne.s32.totalorder %s141, %s144
      %p153 = scmp.eq.s32.totalorder %s21, 1
      %p154 = por %p152, %p153
      %p155 = scmp.ne.s32.totalorder %s144, %s145
      %p156 = scmp.eq.s32.totalorder %s21, 0
      %p157 = por %p155, %p156
      %p158 = scmp.ne.s32.totalorder %s144, %s145
      %p159 = scmp.eq.s32.totalorder %s22, 1
      %p160 = por %p158, %p159
      %p162 = scmp.ne.s32.totalorder %s145, %s161
      %p163 = scmp.eq.s32.totalorder %s22, 0
      %p164 = por %p162, %p163
      %p165 = scmp.le.s32.totalorder 1, %s16
      %p166 = scmp.lt.s32.totalorder %s16, 3
      %p167 = pnand %p165, %p166
      %p168 = pneg %p167
      // Predicated region
      $region9: #{semantic_attention.1} parent=5 // pred_check
        _
      $region10: #{semantic_attention.1} parent=5 // pred_check_branch
        %170 = sbr.rel (%p167) target = $region12
      $region11: #{semantic_attention.1} parent=5 // pred_region
        %s171 = ssub.s32 %s16, 1
        // Predicated region
        $region13: #{semantic_attention.1} parent=11 // pred_check
          %p172 = pneg %p63
        $region14: #{semantic_attention.1} parent=11 // pred_check_branch
          %174 = sbr.rel (%p172) target = $region16
        $region15: #{semantic_attention.1} parent=11 // pred_region
          _
        $region16: #{semantic_attention.1} parent=11 // pred_fallthru
          _
        // Predicated region
        $region17: #{semantic_attention.1} parent=11 // pred_check
          %p175 = pneg %p84
        $region18: #{semantic_attention.1} parent=11 // pred_check_branch
          %177 = sbr.rel (%p175) target = $region20
        $region19: #{semantic_attention.1} parent=11 // pred_region
          _
        $region20: #{semantic_attention.1} parent=11 // pred_fallthru
          _
        // Predicated region
        $region21: #{semantic_attention.1} parent=11 // pred_check
          %p178 = pneg %p105
        $region22: #{semantic_attention.1} parent=11 // pred_check_branch
          %180 = sbr.rel (%p178) target = $region24
        $region23: #{semantic_attention.1} parent=11 // pred_region
          _
        $region24: #{semantic_attention.1} parent=11 // pred_fallthru
          _
      $region12: #{semantic_attention.1} parent=5 // pred_fallthru
        _
      %p181 = scmp.lt.s32.totalorder %s16, 2
      // Predicated region
      $region25: #{semantic_attention.1} parent=5 // pred_check
        %p182 = pneg %p181
      $region26: #{semantic_attention.1} parent=5 // pred_check_branch
        %184 = sbr.rel (%p182) target = $region28
      $region27: #{semantic_attention.1} parent=5 // pred_region
        // Predicated region
        $region29: #{semantic_attention.1} parent=27 // pred_check
          %p185 = pneg %p36
        $region30: #{semantic_attention.1} parent=27 // pred_check_branch
          %187 = sbr.rel (%p185) target = $region32
        $region31: #{semantic_attention.1} parent=27 // pred_region
          %s188 = smul.u32 2, %s16
          %p189 = scmp.lt.s32.totalorder %s188, 3
          %s190 = scalar_select %p189, %s188, 3
          %s191 = smul.addr %s190, 16
          %s192 = smul.addr %s191, 8
          %s193 = scalar_lea.vmem %s0, %s192
          %s194 = smul.u32 2, %s16
        $region32: #{semantic_attention.1} parent=27 // pred_fallthru
          _
      $region28: #{semantic_attention.1} parent=5 // pred_fallthru
        _
      %p195 = scmp.le.s32.totalorder 1, %s16
      %p196 = scmp.lt.s32.totalorder %s16, 3
      %p197 = pnand %p195, %p196
      %p198 = pneg %p197
      // Predicated region
      $region33: #{semantic_attention.1} parent=5 // pred_check
        _
      $region34: #{semantic_attention.1} parent=5 // pred_check_branch
        %200 = sbr.rel (%p197) target = $region36
      $region35: #{semantic_attention.1} parent=5 // pred_region
        %s201 = ssub.s32 %s16, 1
        %s202 = smul.u32 2, %s21
        %p203 = scmp.lt.s32.totalorder %s202, 3
        %s204 = scalar_select %p203, %s202, 3
        %s205 = smul.addr %s204, 16
        %s206 = smul.addr %s205, 8
        %s207 = scalar_lea.vmem %s0, %s206
        %p208 = pneg %p42
        %p209 = pneg %p39
        %p210 = pneg %p63
        %p211 = pneg %p60
        %p212 = pneg %p84
        %p213 = pneg %p81
        %p214 = pneg %p105
        %p215 = pneg %p102
        %p216 = pneg %p131
        %p217 = pneg %p128
        %s218 = sand.u32 %s118, 1
        %s219 = scalar_lea.sflag [#allocation4], %s218
        %s220 = sand.u32 %s118, 1
        %s221 = smul.addr %s220, 16
        %s222 = scalar_lea.vmem [#allocation3], %s221
        %p223 = pneg %p157
        %p224 = pneg %p154
        %s225 = smul.u32 2, %s21
        %p226 = scmp.lt.s32.totalorder %s225, 3
        %s227 = scalar_select %p226, %s225, 3
        %s228 = smul.addr %s227, 16
        %s229 = smul.addr %s228, 8
        %s230 = scalar_lea.vmem %s5, %s229
        %s231 = smul.u32 2, %s21
        %p232 = scmp.lt.s32.totalorder %s231, 3
        %s233 = scalar_select %p232, %s231, 3
        %s234 = smul.addr %s233, 16
        %s235 = smul.addr %s234, 8
        %s236 = scalar_lea.vmem %s0, %s235
        %s237 = smul.u32 2, %s21
        %s238 = smul.u32 2, %s21
        %s239 = smul.u32 2, %s21
        %p240 = scmp.lt.s32.totalorder %s239, 3
        %s241 = scalar_select %p240, %s239, 3
        %s242 = smul.addr %s241, 16
        %s243 = smul.addr %s242, 8
        %s244 = scalar_lea.vmem %s5, %s243
        %s245 = smul.u32 2, %s21
        %v246 = vld [vmem:[%s236] sm:$0xff]
        %v247 = vld [vmem:[%s236 + $0x8] sm:$0xff]
        %v248 = vld [vmem:[%s236 + $0x10] sm:$0xff]
        %v249 = vld [vmem:[%s236 + $0x18] sm:$0xff]
        %v250 = vld [vmem:[%s236 + $0x20] sm:$0xff]
        %v251 = vld [vmem:[%s236 + $0x28] sm:$0xff]
        %v252 = vld [vmem:[%s236 + $0x30] sm:$0xff]
        %v253 = vld [vmem:[%s236 + $0x38] sm:$0xff]
        %v254 = vld [vmem:[%s236 + $0x40] sm:$0xff]
        %v255 = vld [vmem:[%s236 + $0x48] sm:$0xff]
        %v256 = vld [vmem:[%s236 + $0x50] sm:$0xff]
        %v257 = vld [vmem:[%s236 + $0x58] sm:$0xff]
        %v258 = vld [vmem:[%s236 + $0x60] sm:$0xff]
        %v259 = vld [vmem:[%s236 + $0x68] sm:$0xff]
        %v260 = vld [vmem:[%s236 + $0x70] sm:$0xff]
        %v261 = vld [vmem:[%s236 + $0x78] sm:$0xff]
        %v262 = vld [vmem:[%s236 + $0x80] sm:$0xff]
        %v263 = vld [vmem:[%s236 + $0x88] sm:$0xff]
        %v264 = vld [vmem:[%s236 + $0x90] sm:$0xff]
        %v265 = vld [vmem:[%s236 + $0x98] sm:$0xff]
        %v266 = vld [vmem:[%s236 + $0xa0] sm:$0xff]
        %v267 = vld [vmem:[%s236 + $0xa8] sm:$0xff]
        %v268 = vld [vmem:[%s236 + $0xb0] sm:$0xff]
        %v269 = vld [vmem:[%s236 + $0xb8] sm:$0xff]
        %v270 = vld [vmem:[%s236 + $0xc0] sm:$0xff]
        %v271 = vld [vmem:[%s236 + $0xc8] sm:$0xff]
        %v272 = vld [vmem:[%s236 + $0xd0] sm:$0xff]
        %v273 = vld [vmem:[%s236 + $0xd8] sm:$0xff]
        %v274 = vld [vmem:[%s236 + $0xe0] sm:$0xff]
        %v275 = vld [vmem:[%s236 + $0xe8] sm:$0xff]
        %v276 = vld [vmem:[%s236 + $0xf0] sm:$0xff]
        %v277 = vld [vmem:[%s236 + $0xf8] sm:$0xff]
        %v278 = vld [vmem:[%s1] sm:$0xff]
        %v279 = vld [vmem:[%s1 + $0x8] sm:$0xff]
        %v280 = vld [vmem:[%s1 + $0x10] sm:$0xff]
        %v281 = vld [vmem:[%s1 + $0x18] sm:$0xff]
        %v282 = vld [vmem:[%s2] sm:$0x1]
        %v284 = vperm.slane %v282, 0
        %vm286 = vcmask 261120
        %v288 = vsel %vm286, %v246, 0
        %v291 = vsel %vm286, %v247, 0
        %v294 = vsel %vm286, %v248, 0
        %v297 = vsel %vm286, %v249, 0
        %v300 = vsel %vm286, %v250, 0
        %v303 = vsel %vm286, %v251, 0
        %v306 = vsel %vm286, %v252, 0
        %v309 = vsel %vm286, %v253, 0
        %v312 = vsel %vm286, %v254, 0
        %v315 = vsel %vm286, %v255, 0
        %v318 = vsel %vm286, %v256, 0
        %v321 = vsel %vm286, %v257, 0
        %v324 = vsel %vm286, %v258, 0
        %v327 = vsel %vm286, %v259, 0
        %v330 = vsel %vm286, %v260, 0
        %v333 = vsel %vm286, %v261, 0
        %v336 = vsel %vm286, %v262, 0
        %v339 = vsel %vm286, %v263, 0
        %v342 = vsel %vm286, %v264, 0
        %v345 = vsel %vm286, %v265, 0
        %v348 = vsel %vm286, %v266, 0
        %v351 = vsel %vm286, %v267, 0
        %v354 = vsel %vm286, %v268, 0
        %v357 = vsel %vm286, %v269, 0
        %v360 = vsel %vm286, %v270, 0
        %v363 = vsel %vm286, %v271, 0
        %v366 = vsel %vm286, %v272, 0
        %v369 = vsel %vm286, %v273, 0
        %v372 = vsel %vm286, %v274, 0
        %v375 = vsel %vm286, %v275, 0
        %v378 = vsel %vm286, %v276, 0
        %v381 = vsel %vm286, %v277, 0
        %383 = vmatpush.msra.mxu0 0.0
        %384 = vmatpush.msra.mxu0 0.0
        %385 = vmatpush.msra.mxu0 0.0
        %386 = vmatpush.msra.mxu0 0.0
        %387 = vmatpush.msra.mxu0 0.0
        %388 = vmatpush.msra.mxu0 0.0
        %389 = vmatpush.msra.mxu0 0.0
        %390 = vmatpush.msra.mxu0 0.0
        %391 = vmatpush.msra.mxu0 0.0
        %392 = vmatpush.msra.mxu0 0.0
        %393 = vmatpush.msra.mxu0 0.0
        %394 = vmatpush.msra.mxu0 0.0
        %395 = vmatpush.msra.mxu0 %v281
        %396 = vmatpush.msra.mxu0 %v280
        %397 = vmatpush.msra.mxu0 %v279
        %398 = vmatpush.msra.mxu0 %v278
        %399 = vmatmul.f32.gmra.mxu0 %v288
        %v400 = vpop.f32.mrf.mxu0
        %v401 = vadd.f32 %v284, %v400
        %402 = vmatmul.f32.gmra.mxu0 %v291
        %v403 = vpop.f32.mrf.mxu0
        %v404 = vadd.f32 %v284, %v403
        %405 = vmatmul.f32.gmra.mxu0 %v294
        %v406 = vpop.f32.mrf.mxu0
        %v407 = vadd.f32 %v284, %v406
        %408 = vmatmul.f32.gmra.mxu0 %v297
        %v409 = vpop.f32.mrf.mxu0
        %v410 = vadd.f32 %v284, %v409
        %411 = vmatmul.f32.gmra.mxu0 %v300
        %v412 = vpop.f32.mrf.mxu0
        %v413 = vadd.f32 %v284, %v412
        %414 = vmatmul.f32.gmra.mxu0 %v303
        %v415 = vpop.f32.mrf.mxu0
        %v416 = vadd.f32 %v284, %v415
        %417 = vmatmul.f32.gmra.mxu0 %v306
        %v418 = vpop.f32.mrf.mxu0
        %v419 = vadd.f32 %v284, %v418
        %420 = vmatmul.f32.gmra.mxu0 %v309
        %v421 = vpop.f32.mrf.mxu0
        %v422 = vadd.f32 %v284, %v421
        %423 = vmatmul.f32.gmra.mxu0 %v312
        %v424 = vpop.f32.mrf.mxu0
        %v425 = vadd.f32 %v284, %v424
        %426 = vmatmul.f32.gmra.mxu0 %v315
        %v427 = vpop.f32.mrf.mxu0
        %v428 = vadd.f32 %v284, %v427
        %429 = vmatmul.f32.gmra.mxu0 %v318
        %v430 = vpop.f32.mrf.mxu0
        %v431 = vadd.f32 %v284, %v430
        %432 = vmatmul.f32.gmra.mxu0 %v321
        %v433 = vpop.f32.mrf.mxu0
        %v434 = vadd.f32 %v284, %v433
        %435 = vmatmul.f32.gmra.mxu0 %v324
        %v436 = vpop.f32.mrf.mxu0
        %v437 = vadd.f32 %v284, %v436
        %438 = vmatmul.f32.gmra.mxu0 %v327
        %v439 = vpop.f32.mrf.mxu0
        %v440 = vadd.f32 %v284, %v439
        %441 = vmatmul.f32.gmra.mxu0 %v330
        %v442 = vpop.f32.mrf.mxu0
        %v443 = vadd.f32 %v284, %v442
        %444 = vmatmul.f32.gmra.mxu0 %v333
        %v445 = vpop.f32.mrf.mxu0
        %v446 = vadd.f32 %v284, %v445
        %447 = vmatmul.f32.gmra.mxu0 %v336
        %v448 = vpop.f32.mrf.mxu0
        %v449 = vadd.f32 %v284, %v448
        %450 = vmatmul.f32.gmra.mxu0 %v339
        %v451 = vpop.f32.mrf.mxu0
        %v452 = vadd.f32 %v284, %v451
        %453 = vmatmul.f32.gmra.mxu0 %v342
        %v454 = vpop.f32.mrf.mxu0
        %v455 = vadd.f32 %v284, %v454
        %456 = vmatmul.f32.gmra.mxu0 %v345
        %v457 = vpop.f32.mrf.mxu0
        %v458 = vadd.f32 %v284, %v457
        %459 = vmatmul.f32.gmra.mxu0 %v348
        %v460 = vpop.f32.mrf.mxu0
        %v461 = vadd.f32 %v284, %v460
        %462 = vmatmul.f32.gmra.mxu0 %v351
        %v463 = vpop.f32.mrf.mxu0
        %v464 = vadd.f32 %v284, %v463
        %465 = vmatmul.f32.gmra.mxu0 %v354
        %v466 = vpop.f32.mrf.mxu0
        %v467 = vadd.f32 %v284, %v466
        %468 = vmatmul.f32.gmra.mxu0 %v357
        %v469 = vpop.f32.mrf.mxu0
        %v470 = vadd.f32 %v284, %v469
        %471 = vmatmul.f32.gmra.mxu0 %v360
        %v472 = vpop.f32.mrf.mxu0
        %v473 = vadd.f32 %v284, %v472
        %474 = vmatmul.f32.gmra.mxu0 %v363
        %v475 = vpop.f32.mrf.mxu0
        %v476 = vadd.f32 %v284, %v475
        %477 = vmatmul.f32.gmra.mxu0 %v366
        %v478 = vpop.f32.mrf.mxu0
        %v479 = vadd.f32 %v284, %v478
        %480 = vmatmul.f32.gmra.mxu0 %v369
        %v481 = vpop.f32.mrf.mxu0
        %v482 = vadd.f32 %v284, %v481
        %483 = vmatmul.f32.gmra.mxu0 %v372
        %v484 = vpop.f32.mrf.mxu0
        %v485 = vadd.f32 %v284, %v484
        %486 = vmatmul.f32.gmra.mxu0 %v375
        %v487 = vpop.f32.mrf.mxu0
        %v488 = vadd.f32 %v284, %v487
        %489 = vmatmul.f32.gmra.mxu0 %v378
        %v490 = vpop.f32.mrf.mxu0
        %v491 = vadd.f32 %v284, %v490
        %492 = vmatmul.f32.gmra.mxu0 %v381
        %v493 = vpop.f32.mrf.mxu0
        %v494 = vadd.f32 %v284, %v493
        %495 = vdwg.mxu0
        %512 = vrot.lane.b32.xlu0 %v401, 120
        %v513 = vpop.permute.xlu0 %512
        %514 = vrot.lane.b32.xlu0 %v404, 120
        %v515 = vpop.permute.xlu0 %514
        %516 = vrot.lane.b32.xlu0 %v407, 120
        %v517 = vpop.permute.xlu0 %516
        %518 = vrot.lane.b32.xlu0 %v410, 120
        %v519 = vpop.permute.xlu0 %518
        %520 = vrot.lane.b32.xlu0 %v413, 120
        %v521 = vpop.permute.xlu0 %520
        %522 = vrot.lane.b32.xlu0 %v416, 120
        %v523 = vpop.permute.xlu0 %522
        %524 = vrot.lane.b32.xlu0 %v419, 120
        %v525 = vpop.permute.xlu0 %524
        %526 = vrot.lane.b32.xlu0 %v422, 120
        %v527 = vpop.permute.xlu0 %526
        %528 = vrot.lane.b32.xlu0 %v425, 120
        %v529 = vpop.permute.xlu0 %528
        %530 = vrot.lane.b32.xlu0 %v428, 120
        %v531 = vpop.permute.xlu0 %530
        %532 = vrot.lane.b32.xlu0 %v431, 120
        %v533 = vpop.permute.xlu0 %532
        %534 = vrot.lane.b32.xlu0 %v434, 120
        %v535 = vpop.permute.xlu0 %534
        %536 = vrot.lane.b32.xlu0 %v437, 120
        %v537 = vpop.permute.xlu0 %536
        %538 = vrot.lane.b32.xlu0 %v440, 120
        %v539 = vpop.permute.xlu0 %538
        %540 = vrot.lane.b32.xlu0 %v443, 120
        %v541 = vpop.permute.xlu0 %540
        %542 = vrot.lane.b32.xlu0 %v446, 120
        %v543 = vpop.permute.xlu0 %542
        %vm544 = vcmask 64512
        %v545 = vsel %vm544, %v401, 0
        %v547 = vsel %vm544, %v404, 0
        %v549 = vsel %vm544, %v407, 0
        %v551 = vsel %vm544, %v410, 0
        %v553 = vsel %vm544, %v413, 0
        %v555 = vsel %vm544, %v416, 0
        %v557 = vsel %vm544, %v419, 0
        %v559 = vsel %vm544, %v422, 0
        %v561 = vsel %vm544, %v425, 0
        %v563 = vsel %vm544, %v428, 0
        %v565 = vsel %vm544, %v431, 0
        %v567 = vsel %vm544, %v434, 0
        %v569 = vsel %vm544, %v437, 0
        %v571 = vsel %vm544, %v440, 0
        %v573 = vsel %vm544, %v443, 0
        %v575 = vsel %vm544, %v446, 0
        %v577 = vsel %vm544, %v513, 0
        %v579 = vsel %vm544, %v515, 0
        %v581 = vsel %vm544, %v517, 0
        %v583 = vsel %vm544, %v519, 0
        %v585 = vsel %vm544, %v521, 0
        %v587 = vsel %vm544, %v523, 0
        %v589 = vsel %vm544, %v525, 0
        %v591 = vsel %vm544, %v527, 0
        %v593 = vsel %vm544, %v529, 0
        %v595 = vsel %vm544, %v531, 0
        %v597 = vsel %vm544, %v533, 0
        %v599 = vsel %vm544, %v535, 0
        %v601 = vsel %vm544, %v537, 0
        %v603 = vsel %vm544, %v539, 0
        %v605 = vsel %vm544, %v541, 0
        %v607 = vsel %vm544, %v543, 0
        %609 = vmatpush.xpose.msra.mxu0 %v607
        %610 = vmatpush.xpose.msra.mxu0 %v605
        %611 = vmatpush.xpose.msra.mxu0 %v603
        %612 = vmatpush.xpose.msra.mxu0 %v601
        %613 = vmatpush.xpose.msra.mxu0 %v599
        %614 = vmatpush.xpose.msra.mxu0 %v597
        %615 = vmatpush.xpose.msra.mxu0 %v595
        %616 = vmatpush.xpose.msra.mxu0 %v593
        %617 = vmatpush.xpose.msra.mxu0 %v591
        %618 = vmatpush.xpose.msra.mxu0 %v589
        %619 = vmatpush.xpose.msra.mxu0 %v587
        %620 = vmatpush.xpose.msra.mxu0 %v585
        %621 = vmatpush.xpose.msra.mxu0 %v583
        %622 = vmatpush.xpose.msra.mxu0 %v581
        %623 = vmatpush.xpose.msra.mxu0 %v579
        %624 = vmatpush.xpose.msra.mxu0 %v577
        %625 = vmatmul.f32.gmra.mxu0 %v545
        %v626 = vpop.f32.mrf.mxu0
        %v627 = vadd.f32 0.0, %v626
        %628 = vmatmul.f32.gmra.mxu0 %v547
        %v629 = vpop.f32.mrf.mxu0
        %v630 = vadd.f32 0.0, %v629
        %631 = vmatmul.f32.gmra.mxu0 %v549
        %v632 = vpop.f32.mrf.mxu0
        %v633 = vadd.f32 0.0, %v632
        %634 = vmatmul.f32.gmra.mxu0 %v551
        %v635 = vpop.f32.mrf.mxu0
        %v636 = vadd.f32 0.0, %v635
        %637 = vmatmul.f32.gmra.mxu0 %v553
        %v638 = vpop.f32.mrf.mxu0
        %v639 = vadd.f32 0.0, %v638
        %640 = vmatmul.f32.gmra.mxu0 %v555
        %v641 = vpop.f32.mrf.mxu0
        %v642 = vadd.f32 0.0, %v641
        %643 = vmatmul.f32.gmra.mxu0 %v557
        %v644 = vpop.f32.mrf.mxu0
        %v645 = vadd.f32 0.0, %v644
        %646 = vmatmul.f32.gmra.mxu0 %v559
        %v647 = vpop.f32.mrf.mxu0
        %v648 = vadd.f32 0.0, %v647
        %649 = vmatmul.f32.gmra.mxu0 %v561
        %v650 = vpop.f32.mrf.mxu0
        %v651 = vadd.f32 0.0, %v650
        %652 = vmatmul.f32.gmra.mxu0 %v563
        %v653 = vpop.f32.mrf.mxu0
        %v654 = vadd.f32 0.0, %v653
        %655 = vmatmul.f32.gmra.mxu0 %v565
        %v656 = vpop.f32.mrf.mxu0
        %v657 = vadd.f32 0.0, %v656
        %658 = vmatmul.f32.gmra.mxu0 %v567
        %v659 = vpop.f32.mrf.mxu0
        %v660 = vadd.f32 0.0, %v659
        %661 = vmatmul.f32.gmra.mxu0 %v569
        %v662 = vpop.f32.mrf.mxu0
        %v663 = vadd.f32 0.0, %v662
        %664 = vmatmul.f32.gmra.mxu0 %v571
        %v665 = vpop.f32.mrf.mxu0
        %v666 = vadd.f32 0.0, %v665
        %667 = vmatmul.f32.gmra.mxu0 %v573
        %v668 = vpop.f32.mrf.mxu0
        %v669 = vadd.f32 0.0, %v668
        %670 = vmatmul.f32.gmra.mxu0 %v575
        %v671 = vpop.f32.mrf.mxu0
        %v672 = vadd.f32 0.0, %v671
        %673 = vdwg.mxu0
        %690 = vrot.lane.b32.xlu0 %v449, 120
        %v691 = vpop.permute.xlu0 %690
        %692 = vrot.lane.b32.xlu0 %v452, 120
        %v693 = vpop.permute.xlu0 %692
        %694 = vrot.lane.b32.xlu0 %v455, 120
        %v695 = vpop.permute.xlu0 %694
        %696 = vrot.lane.b32.xlu0 %v458, 120
        %v697 = vpop.permute.xlu0 %696
        %698 = vrot.lane.b32.xlu0 %v461, 120
        %v699 = vpop.permute.xlu0 %698
        %700 = vrot.lane.b32.xlu0 %v464, 120
        %v701 = vpop.permute.xlu0 %700
        %702 = vrot.lane.b32.xlu0 %v467, 120
        %v703 = vpop.permute.xlu0 %702
        %704 = vrot.lane.b32.xlu0 %v470, 120
        %v705 = vpop.permute.xlu0 %704
        %706 = vrot.lane.b32.xlu0 %v473, 120
        %v707 = vpop.permute.xlu0 %706
        %708 = vrot.lane.b32.xlu0 %v476, 120
        %v709 = vpop.permute.xlu0 %708
        %710 = vrot.lane.b32.xlu0 %v479, 120
        %v711 = vpop.permute.xlu0 %710
        %712 = vrot.lane.b32.xlu0 %v482, 120
        %v713 = vpop.permute.xlu0 %712
        %714 = vrot.lane.b32.xlu0 %v485, 120
        %v715 = vpop.permute.xlu0 %714
        %716 = vrot.lane.b32.xlu0 %v488, 120
        %v717 = vpop.permute.xlu0 %716
        %718 = vrot.lane.b32.xlu0 %v491, 120
        %v719 = vpop.permute.xlu0 %718
        %720 = vrot.lane.b32.xlu0 %v494, 120
        %v721 = vpop.permute.xlu0 %720
        %v722 = vsel %vm544, %v449, 0
        %v724 = vsel %vm544, %v452, 0
        %v726 = vsel %vm544, %v455, 0
        %v728 = vsel %vm544, %v458, 0
        %v730 = vsel %vm544, %v461, 0
        %v732 = vsel %vm544, %v464, 0
        %v734 = vsel %vm544, %v467, 0
        %v736 = vsel %vm544, %v470, 0
        %v738 = vsel %vm544, %v473, 0
        %v740 = vsel %vm544, %v476, 0
        %v742 = vsel %vm544, %v479, 0
        %v744 = vsel %vm544, %v482, 0
        %v746 = vsel %vm544, %v485, 0
        %v748 = vsel %vm544, %v488, 0
        %v750 = vsel %vm544, %v491, 0
        %v752 = vsel %vm544, %v494, 0
        %v754 = vsel %vm544, %v691, 0
        %v756 = vsel %vm544, %v693, 0
        %v758 = vsel %vm544, %v695, 0
        %v760 = vsel %vm544, %v697, 0
        %v762 = vsel %vm544, %v699, 0
        %v764 = vsel %vm544, %v701, 0
        %v766 = vsel %vm544, %v703, 0
        %v768 = vsel %vm544, %v705, 0
        %v770 = vsel %vm544, %v707, 0
        %v772 = vsel %vm544, %v709, 0
        %v774 = vsel %vm544, %v711, 0
        %v776 = vsel %vm544, %v713, 0
        %v778 = vsel %vm544, %v715, 0
        %v780 = vsel %vm544, %v717, 0
        %v782 = vsel %vm544, %v719, 0
        %v784 = vsel %vm544, %v721, 0
        %786 = vmatpush.xpose.msra.mxu0 %v784
        %787 = vmatpush.xpose.msra.mxu0 %v782
        %788 = vmatpush.xpose.msra.mxu0 %v780
        %789 = vmatpush.xpose.msra.mxu0 %v778
        %790 = vmatpush.xpose.msra.mxu0 %v776
        %791 = vmatpush.xpose.msra.mxu0 %v774
        %792 = vmatpush.xpose.msra.mxu0 %v772
        %793 = vmatpush.xpose.msra.mxu0 %v770
        %794 = vmatpush.xpose.msra.mxu0 %v768
        %795 = vmatpush.xpose.msra.mxu0 %v766
        %796 = vmatpush.xpose.msra.mxu0 %v764
        %797 = vmatpush.xpose.msra.mxu0 %v762
        %798 = vmatpush.xpose.msra.mxu0 %v760
        %799 = vmatpush.xpose.msra.mxu0 %v758
        %800 = vmatpush.xpose.msra.mxu0 %v756
        %801 = vmatpush.xpose.msra.mxu0 %v754
        %802 = vmatmul.f32.gmra.mxu0 %v722
        %v803 = vpop.f32.mrf.mxu0
        %v804 = vadd.f32 0.0, %v803
        %805 = vmatmul.f32.gmra.mxu0 %v724
        %v806 = vpop.f32.mrf.mxu0
        %v807 = vadd.f32 0.0, %v806
        %808 = vmatmul.f32.gmra.mxu0 %v726
        %v809 = vpop.f32.mrf.mxu0
        %v810 = vadd.f32 0.0, %v809
        %811 = vmatmul.f32.gmra.mxu0 %v728
        %v812 = vpop.f32.mrf.mxu0
        %v813 = vadd.f32 0.0, %v812
        %814 = vmatmul.f32.gmra.mxu0 %v730
        %v815 = vpop.f32.mrf.mxu0
        %v816 = vadd.f32 0.0, %v815
        %817 = vmatmul.f32.gmra.mxu0 %v732
        %v818 = vpop.f32.mrf.mxu0
        %v819 = vadd.f32 0.0, %v818
        %820 = vmatmul.f32.gmra.mxu0 %v734
        %v821 = vpop.f32.mrf.mxu0
        %v822 = vadd.f32 0.0, %v821
        %823 = vmatmul.f32.gmra.mxu0 %v736
        %v824 = vpop.f32.mrf.mxu0
        %v825 = vadd.f32 0.0, %v824
        %826 = vmatmul.f32.gmra.mxu0 %v738
        %v827 = vpop.f32.mrf.mxu0
        %v828 = vadd.f32 0.0, %v827
        %829 = vmatmul.f32.gmra.mxu0 %v740
        %v830 = vpop.f32.mrf.mxu0
        %v831 = vadd.f32 0.0, %v830
        %832 = vmatmul.f32.gmra.mxu0 %v742
        %v833 = vpop.f32.mrf.mxu0
        %v834 = vadd.f32 0.0, %v833
        %835 = vmatmul.f32.gmra.mxu0 %v744
        %v836 = vpop.f32.mrf.mxu0
        %v837 = vadd.f32 0.0, %v836
        %838 = vmatmul.f32.gmra.mxu0 %v746
        %v839 = vpop.f32.mrf.mxu0
        %v840 = vadd.f32 0.0, %v839
        %841 = vmatmul.f32.gmra.mxu0 %v748
        %v842 = vpop.f32.mrf.mxu0
        %v843 = vadd.f32 0.0, %v842
        %844 = vmatmul.f32.gmra.mxu0 %v750
        %v845 = vpop.f32.mrf.mxu0
        %v846 = vadd.f32 0.0, %v845
        %847 = vmatmul.f32.gmra.mxu0 %v752
        %v848 = vpop.f32.mrf.mxu0
        %v849 = vadd.f32 0.0, %v848
        %850 = vdwg.mxu0
        %851 = vmax.xlane.f32.xlu0 %v627
        %v852 = vpop.xlane.xlu0 %851
        %853 = vmax.xlane.f32.xlu0 %v630
        %v854 = vpop.xlane.xlu0 %853
        %855 = vmax.xlane.f32.xlu0 %v633
        %v856 = vpop.xlane.xlu0 %855
        %857 = vmax.xlane.f32.xlu0 %v636
        %v858 = vpop.xlane.xlu0 %857
        %859 = vmax.xlane.f32.xlu0 %v639
        %v860 = vpop.xlane.xlu0 %859
        %861 = vmax.xlane.f32.xlu0 %v642
        %v862 = vpop.xlane.xlu0 %861
        %863 = vmax.xlane.f32.xlu0 %v645
        %v864 = vpop.xlane.xlu0 %863
        %865 = vmax.xlane.f32.xlu0 %v648
        %v866 = vpop.xlane.xlu0 %865
        %867 = vmax.xlane.f32.xlu0 %v651
        %v868 = vpop.xlane.xlu0 %867
        %869 = vmax.xlane.f32.xlu0 %v654
        %v870 = vpop.xlane.xlu0 %869
        %871 = vmax.xlane.f32.xlu0 %v657
        %v872 = vpop.xlane.xlu0 %871
        %873 = vmax.xlane.f32.xlu0 %v660
        %v874 = vpop.xlane.xlu0 %873
        %875 = vmax.xlane.f32.xlu0 %v663
        %v876 = vpop.xlane.xlu0 %875
        %877 = vmax.xlane.f32.xlu0 %v666
        %v878 = vpop.xlane.xlu0 %877
        %879 = vmax.xlane.f32.xlu0 %v669
        %v880 = vpop.xlane.xlu0 %879
        %881 = vmax.xlane.f32.xlu0 %v672
        %v882 = vpop.xlane.xlu0 %881
        %883 = vmax.xlane.f32.xlu0 %v804
        %v884 = vpop.xlane.xlu0 %883
        %885 = vmax.xlane.f32.xlu0 %v807
        %v886 = vpop.xlane.xlu0 %885
        %887 = vmax.xlane.f32.xlu0 %v810
        %v888 = vpop.xlane.xlu0 %887
        %889 = vmax.xlane.f32.xlu0 %v813
        %v890 = vpop.xlane.xlu0 %889
        %891 = vmax.xlane.f32.xlu0 %v816
        %v892 = vpop.xlane.xlu0 %891
        %893 = vmax.xlane.f32.xlu0 %v819
        %v894 = vpop.xlane.xlu0 %893
        %895 = vmax.xlane.f32.xlu0 %v822
        %v896 = vpop.xlane.xlu0 %895
        %897 = vmax.xlane.f32.xlu0 %v825
        %v898 = vpop.xlane.xlu0 %897
        %899 = vmax.xlane.f32.xlu0 %v828
        %v900 = vpop.xlane.xlu0 %899
        %901 = vmax.xlane.f32.xlu0 %v831
        %v902 = vpop.xlane.xlu0 %901
        %903 = vmax.xlane.f32.xlu0 %v834
        %v904 = vpop.xlane.xlu0 %903
        %905 = vmax.xlane.f32.xlu0 %v837
        %v906 = vpop.xlane.xlu0 %905
        %907 = vmax.xlane.f32.xlu0 %v840
        %v908 = vpop.xlane.xlu0 %907
        %909 = vmax.xlane.f32.xlu0 %v843
        %v910 = vpop.xlane.xlu0 %909
        %911 = vmax.xlane.f32.xlu0 %v846
        %v912 = vpop.xlane.xlu0 %911
        %913 = vmax.xlane.f32.xlu0 %v849
        %v914 = vpop.xlane.xlu0 %913
        %v915 = vsub.f32 %v627, %v852
        %v916 = vsub.f32 %v630, %v854
        %v917 = vsub.f32 %v633, %v856
        %v918 = vsub.f32 %v636, %v858
        %v919 = vsub.f32 %v639, %v860
        %v920 = vsub.f32 %v642, %v862
        %v921 = vsub.f32 %v645, %v864
        %v922 = vsub.f32 %v648, %v866
        %v923 = vsub.f32 %v651, %v868
        %v924 = vsub.f32 %v654, %v870
        %v925 = vsub.f32 %v657, %v872
        %v926 = vsub.f32 %v660, %v874
        %v927 = vsub.f32 %v663, %v876
        %v928 = vsub.f32 %v666, %v878
        %v929 = vsub.f32 %v669, %v880
        %v930 = vsub.f32 %v672, %v882
        %v931 = vsub.f32 %v804, %v884
        %v932 = vsub.f32 %v807, %v886
        %v933 = vsub.f32 %v810, %v888
        %v934 = vsub.f32 %v813, %v890
        %v935 = vsub.f32 %v816, %v892
        %v936 = vsub.f32 %v819, %v894
        %v937 = vsub.f32 %v822, %v896
        %v938 = vsub.f32 %v825, %v898
        %v939 = vsub.f32 %v828, %v900
        %v940 = vsub.f32 %v831, %v902
        %v941 = vsub.f32 %v834, %v904
        %v942 = vsub.f32 %v837, %v906
        %v943 = vsub.f32 %v840, %v908
        %v944 = vsub.f32 %v843, %v910
        %v945 = vsub.f32 %v846, %v912
        %v946 = vsub.f32 %v849, %v914
        %v947 = vmul.f32 %v915, 1.442695
        %v948 = vpow.pop %v947
        %v949 = vmul.f32 %v916, 1.442695
        %v950 = vpow.pop %v949
        %v951 = vmul.f32 %v917, 1.442695
        %v952 = vpow.pop %v951
        %v953 = vmul.f32 %v918, 1.442695
        %v954 = vpow.pop %v953
        %v955 = vmul.f32 %v919, 1.442695
        %v956 = vpow.pop %v955
        %v957 = vmul.f32 %v920, 1.442695
        %v958 = vpow.pop %v957
        %v959 = vmul.f32 %v921, 1.442695
        %v960 = vpow.pop %v959
        %v961 = vmul.f32 %v922, 1.442695
        %v962 = vpow.pop %v961
        %v963 = vmul.f32 %v923, 1.442695
        %v964 = vpow.pop %v963
        %v965 = vmul.f32 %v924, 1.442695
        %v966 = vpow.pop %v965
        %v967 = vmul.f32 %v925, 1.442695
        %v968 = vpow.pop %v967
        %v969 = vmul.f32 %v926, 1.442695
        %v970 = vpow.pop %v969
        %v971 = vmul.f32 %v927, 1.442695
        %v972 = vpow.pop %v971
        %v973 = vmul.f32 %v928, 1.442695
        %v974 = vpow.pop %v973
        %v975 = vmul.f32 %v929, 1.442695
        %v976 = vpow.pop %v975
        %v977 = vmul.f32 %v930, 1.442695
        %v978 = vpow.pop %v977
        %v979 = vmul.f32 %v931, 1.442695
        %v980 = vpow.pop %v979
        %v981 = vmul.f32 %v932, 1.442695
        %v982 = vpow.pop %v981
        %v983 = vmul.f32 %v933, 1.442695
        %v984 = vpow.pop %v983
        %v985 = vmul.f32 %v934, 1.442695
        %v986 = vpow.pop %v985
        %v987 = vmul.f32 %v935, 1.442695
        %v988 = vpow.pop %v987
        %v989 = vmul.f32 %v936, 1.442695
        %v990 = vpow.pop %v989
        %v991 = vmul.f32 %v937, 1.442695
        %v992 = vpow.pop %v991
        %v993 = vmul.f32 %v938, 1.442695
        %v994 = vpow.pop %v993
        %v995 = vmul.f32 %v939, 1.442695
        %v996 = vpow.pop %v995
        %v997 = vmul.f32 %v940, 1.442695
        %v998 = vpow.pop %v997
        %v999 = vmul.f32 %v941, 1.442695
        %v1000 = vpow.pop %v999
        %v1001 = vmul.f32 %v942, 1.442695
        %v1002 = vpow.pop %v1001
        %v1003 = vmul.f32 %v943, 1.442695
        %v1004 = vpow.pop %v1003
        %v1005 = vmul.f32 %v944, 1.442695
        %v1006 = vpow.pop %v1005
        %v1007 = vmul.f32 %v945, 1.442695
        %v1008 = vpow.pop %v1007
        %v1009 = vmul.f32 %v946, 1.442695
        %v1010 = vpow.pop %v1009
        %1011 = vadd.xlane.f32.xlu0 %v948
        %v1012 = vpop.xlane.xlu0 %1011
        %1013 = vadd.xlane.f32.xlu0 %v950
        %v1014 = vpop.xlane.xlu0 %1013
        %1015 = vadd.xlane.f32.xlu0 %v952
        %v1016 = vpop.xlane.xlu0 %1015
        %1017 = vadd.xlane.f32.xlu0 %v954
        %v1018 = vpop.xlane.xlu0 %1017
        %1019 = vadd.xlane.f32.xlu0 %v956
        %v1020 = vpop.xlane.xlu0 %1019
        %1021 = vadd.xlane.f32.xlu0 %v958
        %v1022 = vpop.xlane.xlu0 %1021
        %1023 = vadd.xlane.f32.xlu0 %v960
        %v1024 = vpop.xlane.xlu0 %1023
        %1025 = vadd.xlane.f32.xlu0 %v962
        %v1026 = vpop.xlane.xlu0 %1025
        %1027 = vadd.xlane.f32.xlu0 %v964
        %v1028 = vpop.xlane.xlu0 %1027
        %1029 = vadd.xlane.f32.xlu0 %v966
        %v1030 = vpop.xlane.xlu0 %1029
        %1031 = vadd.xlane.f32.xlu0 %v968
        %v1032 = vpop.xlane.xlu0 %1031
        %1033 = vadd.xlane.f32.xlu0 %v970
        %v1034 = vpop.xlane.xlu0 %1033
        %1035 = vadd.xlane.f32.xlu0 %v972
        %v1036 = vpop.xlane.xlu0 %1035
        %1037 = vadd.xlane.f32.xlu0 %v974
        %v1038 = vpop.xlane.xlu0 %1037
        %1039 = vadd.xlane.f32.xlu0 %v976
        %v1040 = vpop.xlane.xlu0 %1039
        %1041 = vadd.xlane.f32.xlu0 %v978
        %v1042 = vpop.xlane.xlu0 %1041
        %1043 = vadd.xlane.f32.xlu0 %v980
        %v1044 = vpop.xlane.xlu0 %1043
        %1045 = vadd.xlane.f32.xlu0 %v982
        %v1046 = vpop.xlane.xlu0 %1045
        %1047 = vadd.xlane.f32.xlu0 %v984
        %v1048 = vpop.xlane.xlu0 %1047
        %1049 = vadd.xlane.f32.xlu0 %v986
        %v1050 = vpop.xlane.xlu0 %1049
        %1051 = vadd.xlane.f32.xlu0 %v988
        %v1052 = vpop.xlane.xlu0 %1051
        %1053 = vadd.xlane.f32.xlu0 %v990
        %v1054 = vpop.xlane.xlu0 %1053
        %1055 = vadd.xlane.f32.xlu0 %v992
        %v1056 = vpop.xlane.xlu0 %1055
        %1057 = vadd.xlane.f32.xlu0 %v994
        %v1058 = vpop.xlane.xlu0 %1057
        %1059 = vadd.xlane.f32.xlu0 %v996
        %v1060 = vpop.xlane.xlu0 %1059
        %1061 = vadd.xlane.f32.xlu0 %v998
        %v1062 = vpop.xlane.xlu0 %1061
        %1063 = vadd.xlane.f32.xlu0 %v1000
        %v1064 = vpop.xlane.xlu0 %1063
        %1065 = vadd.xlane.f32.xlu0 %v1002
        %v1066 = vpop.xlane.xlu0 %1065
        %1067 = vadd.xlane.f32.xlu0 %v1004
        %v1068 = vpop.xlane.xlu0 %1067
        %1069 = vadd.xlane.f32.xlu0 %v1006
        %v1070 = vpop.xlane.xlu0 %1069
        %1071 = vadd.xlane.f32.xlu0 %v1008
        %v1072 = vpop.xlane.xlu0 %1071
        %1073 = vadd.xlane.f32.xlu0 %v1010
        %v1074 = vpop.xlane.xlu0 %1073
        %v1075 = vrcp.pop %v1012
        %v1076 = vrcp.pop %v1014
        %v1077 = vrcp.pop %v1016
        %v1078 = vrcp.pop %v1018
        %v1079 = vrcp.pop %v1020
        %v1080 = vrcp.pop %v1022
        %v1081 = vrcp.pop %v1024
        %v1082 = vrcp.pop %v1026
        %v1083 = vrcp.pop %v1028
        %v1084 = vrcp.pop %v1030
        %v1085 = vrcp.pop %v1032
        %v1086 = vrcp.pop %v1034
        %v1087 = vrcp.pop %v1036
        %v1088 = vrcp.pop %v1038
        %v1089 = vrcp.pop %v1040
        %v1090 = vrcp.pop %v1042
        %v1091 = vrcp.pop %v1044
        %v1092 = vrcp.pop %v1046
        %v1093 = vrcp.pop %v1048
        %v1094 = vrcp.pop %v1050
        %v1095 = vrcp.pop %v1052
        %v1096 = vrcp.pop %v1054
        %v1097 = vrcp.pop %v1056
        %v1098 = vrcp.pop %v1058
        %v1099 = vrcp.pop %v1060
        %v1100 = vrcp.pop %v1062
        %v1101 = vrcp.pop %v1064
        %v1102 = vrcp.pop %v1066
        %v1103 = vrcp.pop %v1068
        %v1104 = vrcp.pop %v1070
        %v1105 = vrcp.pop %v1072
        %v1106 = vrcp.pop %v1074
        %v1107 = vmul.f32 %v948, %v1075
        %v1108 = vmul.f32 %v950, %v1076
        %v1109 = vmul.f32 %v952, %v1077
        %v1110 = vmul.f32 %v954, %v1078
        %v1111 = vmul.f32 %v956, %v1079
        %v1112 = vmul.f32 %v958, %v1080
        %v1113 = vmul.f32 %v960, %v1081
        %v1114 = vmul.f32 %v962, %v1082
        %v1115 = vmul.f32 %v964, %v1083
        %v1116 = vmul.f32 %v966, %v1084
        %v1117 = vmul.f32 %v968, %v1085
        %v1118 = vmul.f32 %v970, %v1086
        %v1119 = vmul.f32 %v972, %v1087
        %v1120 = vmul.f32 %v974, %v1088
        %v1121 = vmul.f32 %v976, %v1089
        %v1122 = vmul.f32 %v978, %v1090
        %v1123 = vmul.f32 %v980, %v1091
        %v1124 = vmul.f32 %v982, %v1092
        %v1125 = vmul.f32 %v984, %v1093
        %v1126 = vmul.f32 %v986, %v1094
        %v1127 = vmul.f32 %v988, %v1095
        %v1128 = vmul.f32 %v990, %v1096
        %v1129 = vmul.f32 %v992, %v1097
        %v1130 = vmul.f32 %v994, %v1098
        %v1131 = vmul.f32 %v996, %v1099
        %v1132 = vmul.f32 %v998, %v1100
        %v1133 = vmul.f32 %v1000, %v1101
        %v1134 = vmul.f32 %v1002, %v1102
        %v1135 = vmul.f32 %v1004, %v1103
        %v1136 = vmul.f32 %v1006, %v1104
        %v1137 = vmul.f32 %v1008, %v1105
        %v1138 = vmul.f32 %v1010, %v1106
        %1139 = vrot.lane.b32.xlu0 %v401, 112
        %v1140 = vpop.permute.xlu0 %1139
        %1141 = vrot.lane.b32.xlu0 %v404, 112
        %v1142 = vpop.permute.xlu0 %1141
        %1143 = vrot.lane.b32.xlu0 %v407, 112
        %v1144 = vpop.permute.xlu0 %1143
        %1145 = vrot.lane.b32.xlu0 %v410, 112
        %v1146 = vpop.permute.xlu0 %1145
        %1147 = vrot.lane.b32.xlu0 %v413, 112
        %v1148 = vpop.permute.xlu0 %1147
        %1149 = vrot.lane.b32.xlu0 %v416, 112
        %v1150 = vpop.permute.xlu0 %1149
        %1151 = vrot.lane.b32.xlu0 %v419, 112
        %v1152 = vpop.permute.xlu0 %1151
        %1153 = vrot.lane.b32.xlu0 %v422, 112
        %v1154 = vpop.permute.xlu0 %1153
        %1155 = vrot.lane.b32.xlu0 %v425, 112
        %v1156 = vpop.permute.xlu0 %1155
        %1157 = vrot.lane.b32.xlu0 %v428, 112
        %v1158 = vpop.permute.xlu0 %1157
        %1159 = vrot.lane.b32.xlu0 %v431, 112
        %v1160 = vpop.permute.xlu0 %1159
        %1161 = vrot.lane.b32.xlu0 %v434, 112
        %v1162 = vpop.permute.xlu0 %1161
        %1163 = vrot.lane.b32.xlu0 %v437, 112
        %v1164 = vpop.permute.xlu0 %1163
        %1165 = vrot.lane.b32.xlu0 %v440, 112
        %v1166 = vpop.permute.xlu0 %1165
        %1167 = vrot.lane.b32.xlu0 %v443, 112
        %v1168 = vpop.permute.xlu0 %1167
        %1169 = vrot.lane.b32.xlu0 %v446, 112
        %v1170 = vpop.permute.xlu0 %1169
        %1187 = vmatpush.msra.mxu0 %v1170
        %1188 = vmatpush.msra.mxu0 %v1168
        %1189 = vmatpush.msra.mxu0 %v1166
        %1190 = vmatpush.msra.mxu0 %v1164
        %1191 = vmatpush.msra.mxu0 %v1162
        %1192 = vmatpush.msra.mxu0 %v1160
        %1193 = vmatpush.msra.mxu0 %v1158
        %1194 = vmatpush.msra.mxu0 %v1156
        %1195 = vmatpush.msra.mxu0 %v1154
        %1196 = vmatpush.msra.mxu0 %v1152
        %1197 = vmatpush.msra.mxu0 %v1150
        %1198 = vmatpush.msra.mxu0 %v1148
        %1199 = vmatpush.msra.mxu0 %v1146
        %1200 = vmatpush.msra.mxu0 %v1144
        %1201 = vmatpush.msra.mxu0 %v1142
        %1202 = vmatpush.msra.mxu0 %v1140
        %1203 = vmatmul.f32.gmra.mxu0 %v1107
        %v1204 = vpop.f32.mrf.mxu0
        %v1205 = vadd.f32 0.0, %v1204
        %1206 = vmatmul.f32.gmra.mxu0 %v1108
        %v1207 = vpop.f32.mrf.mxu0
        %v1208 = vadd.f32 0.0, %v1207
        %1209 = vmatmul.f32.gmra.mxu0 %v1109
        %v1210 = vpop.f32.mrf.mxu0
        %v1211 = vadd.f32 0.0, %v1210
        %1212 = vmatmul.f32.gmra.mxu0 %v1110
        %v1213 = vpop.f32.mrf.mxu0
        %v1214 = vadd.f32 0.0, %v1213
        %1215 = vmatmul.f32.gmra.mxu0 %v1111
        %v1216 = vpop.f32.mrf.mxu0
        %v1217 = vadd.f32 0.0, %v1216
        %1218 = vmatmul.f32.gmra.mxu0 %v1112
        %v1219 = vpop.f32.mrf.mxu0
        %v1220 = vadd.f32 0.0, %v1219
        %1221 = vmatmul.f32.gmra.mxu0 %v1113
        %v1222 = vpop.f32.mrf.mxu0
        %v1223 = vadd.f32 0.0, %v1222
        %1224 = vmatmul.f32.gmra.mxu0 %v1114
        %v1225 = vpop.f32.mrf.mxu0
        %v1226 = vadd.f32 0.0, %v1225
        %1227 = vmatmul.f32.gmra.mxu0 %v1115
        %v1228 = vpop.f32.mrf.mxu0
        %v1229 = vadd.f32 0.0, %v1228
        %1230 = vmatmul.f32.gmra.mxu0 %v1116
        %v1231 = vpop.f32.mrf.mxu0
        %v1232 = vadd.f32 0.0, %v1231
        %1233 = vmatmul.f32.gmra.mxu0 %v1117
        %v1234 = vpop.f32.mrf.mxu0
        %v1235 = vadd.f32 0.0, %v1234
        %1236 = vmatmul.f32.gmra.mxu0 %v1118
        %v1237 = vpop.f32.mrf.mxu0
        %v1238 = vadd.f32 0.0, %v1237
        %1239 = vmatmul.f32.gmra.mxu0 %v1119
        %v1240 = vpop.f32.mrf.mxu0
        %v1241 = vadd.f32 0.0, %v1240
        %1242 = vmatmul.f32.gmra.mxu0 %v1120
        %v1243 = vpop.f32.mrf.mxu0
        %v1244 = vadd.f32 0.0, %v1243
        %1245 = vmatmul.f32.gmra.mxu0 %v1121
        %v1246 = vpop.f32.mrf.mxu0
        %v1247 = vadd.f32 0.0, %v1246
        %1248 = vmatmul.f32.gmra.mxu0 %v1122
        %v1249 = vpop.f32.mrf.mxu0
        %v1250 = vadd.f32 0.0, %v1249
        %1251 = vdwg.mxu0
        %1252 = vrot.lane.b32.xlu0 %v449, 112
        %v1253 = vpop.permute.xlu0 %1252
        %1254 = vrot.lane.b32.xlu0 %v452, 112
        %v1255 = vpop.permute.xlu0 %1254
        %1256 = vrot.lane.b32.xlu0 %v455, 112
        %v1257 = vpop.permute.xlu0 %1256
        %1258 = vrot.lane.b32.xlu0 %v458, 112
        %v1259 = vpop.permute.xlu0 %1258
        %1260 = vrot.lane.b32.xlu0 %v461, 112
        %v1261 = vpop.permute.xlu0 %1260
        %1262 = vrot.lane.b32.xlu0 %v464, 112
        %v1263 = vpop.permute.xlu0 %1262
        %1264 = vrot.lane.b32.xlu0 %v467, 112
        %v1265 = vpop.permute.xlu0 %1264
        %1266 = vrot.lane.b32.xlu0 %v470, 112
        %v1267 = vpop.permute.xlu0 %1266
        %1268 = vrot.lane.b32.xlu0 %v473, 112
        %v1269 = vpop.permute.xlu0 %1268
        %1270 = vrot.lane.b32.xlu0 %v476, 112
        %v1271 = vpop.permute.xlu0 %1270
        %1272 = vrot.lane.b32.xlu0 %v479, 112
        %v1273 = vpop.permute.xlu0 %1272
        %1274 = vrot.lane.b32.xlu0 %v482, 112
        %v1275 = vpop.permute.xlu0 %1274
        %1276 = vrot.lane.b32.xlu0 %v485, 112
        %v1277 = vpop.permute.xlu0 %1276
        %1278 = vrot.lane.b32.xlu0 %v488, 112
        %v1279 = vpop.permute.xlu0 %1278
        %1280 = vrot.lane.b32.xlu0 %v491, 112
        %v1281 = vpop.permute.xlu0 %1280
        %1282 = vrot.lane.b32.xlu0 %v494, 112
        %v1283 = vpop.permute.xlu0 %1282
        %1300 = vmatpush.msra.mxu0 %v1283
        %1301 = vmatpush.msra.mxu0 %v1281
        %1302 = vmatpush.msra.mxu0 %v1279
        %1303 = vmatpush.msra.mxu0 %v1277
        %1304 = vmatpush.msra.mxu0 %v1275
        %1305 = vmatpush.msra.mxu0 %v1273
        %1306 = vmatpush.msra.mxu0 %v1271
        %1307 = vmatpush.msra.mxu0 %v1269
        %1308 = vmatpush.msra.mxu0 %v1267
        %1309 = vmatpush.msra.mxu0 %v1265
        %1310 = vmatpush.msra.mxu0 %v1263
        %1311 = vmatpush.msra.mxu0 %v1261
        %1312 = vmatpush.msra.mxu0 %v1259
        %1313 = vmatpush.msra.mxu0 %v1257
        %1314 = vmatpush.msra.mxu0 %v1255
        %1315 = vmatpush.msra.mxu0 %v1253
        %1316 = vmatmul.f32.gmra.mxu0 %v1123
        %v1317 = vpop.f32.mrf.mxu0
        %v1318 = vadd.f32 0.0, %v1317
        %1319 = vmatmul.f32.gmra.mxu0 %v1124
        %v1320 = vpop.f32.mrf.mxu0
        %v1321 = vadd.f32 0.0, %v1320
        %1322 = vmatmul.f32.gmra.mxu0 %v1125
        %v1323 = vpop.f32.mrf.mxu0
        %v1324 = vadd.f32 0.0, %v1323
        %1325 = vmatmul.f32.gmra.mxu0 %v1126
        %v1326 = vpop.f32.mrf.mxu0
        %v1327 = vadd.f32 0.0, %v1326
        %1328 = vmatmul.f32.gmra.mxu0 %v1127
        %v1329 = vpop.f32.mrf.mxu0
        %v1330 = vadd.f32 0.0, %v1329
        %1331 = vmatmul.f32.gmra.mxu0 %v1128
        %v1332 = vpop.f32.mrf.mxu0
        %v1333 = vadd.f32 0.0, %v1332
        %1334 = vmatmul.f32.gmra.mxu0 %v1129
        %v1335 = vpop.f32.mrf.mxu0
        %v1336 = vadd.f32 0.0, %v1335
        %1337 = vmatmul.f32.gmra.mxu0 %v1130
        %v1338 = vpop.f32.mrf.mxu0
        %v1339 = vadd.f32 0.0, %v1338
        %1340 = vmatmul.f32.gmra.mxu0 %v1131
        %v1341 = vpop.f32.mrf.mxu0
        %v1342 = vadd.f32 0.0, %v1341
        %1343 = vmatmul.f32.gmra.mxu0 %v1132
        %v1344 = vpop.f32.mrf.mxu0
        %v1345 = vadd.f32 0.0, %v1344
        %1346 = vmatmul.f32.gmra.mxu0 %v1133
        %v1347 = vpop.f32.mrf.mxu0
        %v1348 = vadd.f32 0.0, %v1347
        %1349 = vmatmul.f32.gmra.mxu0 %v1134
        %v1350 = vpop.f32.mrf.mxu0
        %v1351 = vadd.f32 0.0, %v1350
        %1352 = vmatmul.f32.gmra.mxu0 %v1135
        %v1353 = vpop.f32.mrf.mxu0
        %v1354 = vadd.f32 0.0, %v1353
        %1355 = vmatmul.f32.gmra.mxu0 %v1136
        %v1356 = vpop.f32.mrf.mxu0
        %v1357 = vadd.f32 0.0, %v1356
        %1358 = vmatmul.f32.gmra.mxu0 %v1137
        %v1359 = vpop.f32.mrf.mxu0
        %v1360 = vadd.f32 0.0, %v1359
        %1361 = vmatmul.f32.gmra.mxu0 %v1138
        %v1362 = vpop.f32.mrf.mxu0
        %v1363 = vadd.f32 0.0, %v1362
        %1364 = vdwg.mxu0
        %s1365 = sld [smem:[#allocation2]]
        %v1366 = vstv %s1365
        %v1367 = vmul.f32 %v1366, %v1205
        %v1368 = vmul.f32 %v1366, %v1208
        %v1369 = vmul.f32 %v1366, %v1211
        %v1370 = vmul.f32 %v1366, %v1214
        %v1371 = vmul.f32 %v1366, %v1217
        %v1372 = vmul.f32 %v1366, %v1220
        %v1373 = vmul.f32 %v1366, %v1223
        %v1374 = vmul.f32 %v1366, %v1226
        %v1375 = vmul.f32 %v1366, %v1229
        %v1376 = vmul.f32 %v1366, %v1232
        %v1377 = vmul.f32 %v1366, %v1235
        %v1378 = vmul.f32 %v1366, %v1238
        %v1379 = vmul.f32 %v1366, %v1241
        %v1380 = vmul.f32 %v1366, %v1244
        %v1381 = vmul.f32 %v1366, %v1247
        %v1382 = vmul.f32 %v1366, %v1250
        %v1383 = vmul.f32 %v1366, %v1318
        %v1384 = vmul.f32 %v1366, %v1321
        %v1385 = vmul.f32 %v1366, %v1324
        %v1386 = vmul.f32 %v1366, %v1327
        %v1387 = vmul.f32 %v1366, %v1330
        %v1388 = vmul.f32 %v1366, %v1333
        %v1389 = vmul.f32 %v1366, %v1336
        %v1390 = vmul.f32 %v1366, %v1339
        %v1391 = vmul.f32 %v1366, %v1342
        %v1392 = vmul.f32 %v1366, %v1345
        %v1393 = vmul.f32 %v1366, %v1348
        %v1394 = vmul.f32 %v1366, %v1351
        %v1395 = vmul.f32 %v1366, %v1354
        %v1396 = vmul.f32 %v1366, %v1357
        %v1397 = vmul.f32 %v1366, %v1360
        %v1398 = vmul.f32 %v1366, %v1363
        %v1399 = vadd.f32 %v1367, %v246
        %v1400 = vadd.f32 %v1368, %v247
        %v1401 = vadd.f32 %v1369, %v248
        %v1402 = vadd.f32 %v1370, %v249
        %v1403 = vadd.f32 %v1371, %v250
        %v1404 = vadd.f32 %v1372, %v251
        %v1405 = vadd.f32 %v1373, %v252
        %v1406 = vadd.f32 %v1374, %v253
        %v1407 = vadd.f32 %v1375, %v254
        %v1408 = vadd.f32 %v1376, %v255
        %v1409 = vadd.f32 %v1377, %v256
        %v1410 = vadd.f32 %v1378, %v257
        %v1411 = vadd.f32 %v1379, %v258
        %v1412 = vadd.f32 %v1380, %v259
        %v1413 = vadd.f32 %v1381, %v260
        %v1414 = vadd.f32 %v1382, %v261
        %v1415 = vadd.f32 %v1383, %v262
        %v1416 = vadd.f32 %v1384, %v263
        %v1417 = vadd.f32 %v1385, %v264
        %v1418 = vadd.f32 %v1386, %v265
        %v1419 = vadd.f32 %v1387, %v266
        %v1420 = vadd.f32 %v1388, %v267
        %v1421 = vadd.f32 %v1389, %v268
        %v1422 = vadd.f32 %v1390, %v269
        %v1423 = vadd.f32 %v1391, %v270
        %v1424 = vadd.f32 %v1392, %v271
        %v1425 = vadd.f32 %v1393, %v272
        %v1426 = vadd.f32 %v1394, %v273
        %v1427 = vadd.f32 %v1395, %v274
        %v1428 = vadd.f32 %v1396, %v275
        %v1429 = vadd.f32 %v1397, %v276
        %v1430 = vadd.f32 %v1398, %v277
        %1431 = vxpose.xlu0.b32.start [1/16] %v401, 128
        %1432 = vxpose.xlu0.b32.cont [2/16] %v404, 128
        %1433 = vxpose.xlu0.b32.cont [3/16] %v407, 128
        %1434 = vxpose.xlu0.b32.cont [4/16] %v410, 128
        %1435 = vxpose.xlu0.b32.cont [5/16] %v413, 128
        %1436 = vxpose.xlu0.b32.cont [6/16] %v416, 128
        %1437 = vxpose.xlu0.b32.cont [7/16] %v419, 128
        %1438 = vxpose.xlu0.b32.cont [8/16] %v422, 128
        %1439 = vxpose.xlu0.b32.cont [9/16] %v425, 128
        %1440 = vxpose.xlu0.b32.cont [10/16] %v428, 128
        %1441 = vxpose.xlu0.b32.cont [11/16] %v431, 128
        %1442 = vxpose.xlu0.b32.cont [12/16] %v434, 128
        %1443 = vxpose.xlu0.b32.cont [13/16] %v437, 128
        %1444 = vxpose.xlu0.b32.cont [14/16] %v440, 128
        %1445 = vxpose.xlu0.b32.cont [15/16] %v443, 128
        %1446 = vxpose.xlu0.b32.end [16/16] %v446, 128
        %v1447 = vpop.trf.xlu0
        %v1448 = vpop.trf.xlu0
        %v1449 = vpop.trf.xlu0
        %v1450 = vpop.trf.xlu0
        %v1451 = vpop.trf.xlu0
        %v1452 = vpop.trf.xlu0
        %v1453 = vpop.trf.xlu0
        %v1454 = vpop.trf.xlu0
        %v1455 = vpop.trf.xlu0
        %v1456 = vpop.trf.xlu0
        %v1457 = vpop.trf.xlu0
        %v1458 = vpop.trf.xlu0
        %v1459 = vpop.trf.xlu0
        %v1460 = vpop.trf.xlu0
        %v1461 = vpop.trf.xlu0
        %v1462 = vpop.trf.xlu0
        %1463 = vxpose.xlu0.b32.start [1/16] %v449, 128
        %1464 = vxpose.xlu0.b32.cont [2/16] %v452, 128
        %1465 = vxpose.xlu0.b32.cont [3/16] %v455, 128
        %1466 = vxpose.xlu0.b32.cont [4/16] %v458, 128
        %1467 = vxpose.xlu0.b32.cont [5/16] %v461, 128
        %1468 = vxpose.xlu0.b32.cont [6/16] %v464, 128
        %1469 = vxpose.xlu0.b32.cont [7/16] %v467, 128
        %1470 = vxpose.xlu0.b32.cont [8/16] %v470, 128
        %1471 = vxpose.xlu0.b32.cont [9/16] %v473, 128
        %1472 = vxpose.xlu0.b32.cont [10/16] %v476, 128
        %1473 = vxpose.xlu0.b32.cont [11/16] %v479, 128
        %1474 = vxpose.xlu0.b32.cont [12/16] %v482, 128
        %1475 = vxpose.xlu0.b32.cont [13/16] %v485, 128
        %1476 = vxpose.xlu0.b32.cont [14/16] %v488, 128
        %1477 = vxpose.xlu0.b32.cont [15/16] %v491, 128
        %1478 = vxpose.xlu0.b32.end [16/16] %v494, 128
        %v1479 = vpop.trf.xlu0
        %v1480 = vpop.trf.xlu0
        %v1481 = vpop.trf.xlu0
        %v1482 = vpop.trf.xlu0
        %v1483 = vpop.trf.xlu0
        %v1484 = vpop.trf.xlu0
        %v1485 = vpop.trf.xlu0
        %v1486 = vpop.trf.xlu0
        %v1487 = vpop.trf.xlu0
        %v1488 = vpop.trf.xlu0
        %v1489 = vpop.trf.xlu0
        %v1490 = vpop.trf.xlu0
        %v1491 = vpop.trf.xlu0
        %v1492 = vpop.trf.xlu0
        %v1493 = vpop.trf.xlu0
        %v1494 = vpop.trf.xlu0
        %1495 = vst [vmem:[%s222] sm:$0xff] %v1447
        %1496 = vst [vmem:[%s222 + $0x8] sm:$0xff] %v1479
        %1497 = vst.msk [vmem:[%s244] sm:$0xff] %vm286, %v1399
        %1498 = vst.msk [vmem:[%s244 + $0x8] sm:$0xff] %vm286, %v1400
        %1499 = vst.msk [vmem:[%s244 + $0x10] sm:$0xff] %vm286, %v1401
        %1500 = vst.msk [vmem:[%s244 + $0x18] sm:$0xff] %vm286, %v1402
        %1501 = vst.msk [vmem:[%s244 + $0x20] sm:$0xff] %vm286, %v1403
        %1502 = vst.msk [vmem:[%s244 + $0x28] sm:$0xff] %vm286, %v1404
        %1503 = vst.msk [vmem:[%s244 + $0x30] sm:$0xff] %vm286, %v1405
        %1504 = vst.msk [vmem:[%s244 + $0x38] sm:$0xff] %vm286, %v1406
        %1505 = vst.msk [vmem:[%s244 + $0x40] sm:$0xff] %vm286, %v1407
        %1506 = vst.msk [vmem:[%s244 + $0x48] sm:$0xff] %vm286, %v1408
        %1507 = vst.msk [vmem:[%s244 + $0x50] sm:$0xff] %vm286, %v1409
        %1508 = vst.msk [vmem:[%s244 + $0x58] sm:$0xff] %vm286, %v1410
        %1509 = vst.msk [vmem:[%s244 + $0x60] sm:$0xff] %vm286, %v1411
        %1510 = vst.msk [vmem:[%s244 + $0x68] sm:$0xff] %vm286, %v1412
        %1511 = vst.msk [vmem:[%s244 + $0x70] sm:$0xff] %vm286, %v1413
        %1512 = vst.msk [vmem:[%s244 + $0x78] sm:$0xff] %vm286, %v1414
        %1513 = vst.msk [vmem:[%s244 + $0x80] sm:$0xff] %vm286, %v1415
        %1514 = vst.msk [vmem:[%s244 + $0x88] sm:$0xff] %vm286, %v1416
        %1515 = vst.msk [vmem:[%s244 + $0x90] sm:$0xff] %vm286, %v1417
        %1516 = vst.msk [vmem:[%s244 + $0x98] sm:$0xff] %vm286, %v1418
        %1517 = vst.msk [vmem:[%s244 + $0xa0] sm:$0xff] %vm286, %v1419
        %1518 = vst.msk [vmem:[%s244 + $0xa8] sm:$0xff] %vm286, %v1420
        %1519 = vst.msk [vmem:[%s244 + $0xb0] sm:$0xff] %vm286, %v1421
        %1520 = vst.msk [vmem:[%s244 + $0xb8] sm:$0xff] %vm286, %v1422
        %1521 = vst.msk [vmem:[%s244 + $0xc0] sm:$0xff] %vm286, %v1423
        %1522 = vst.msk [vmem:[%s244 + $0xc8] sm:$0xff] %vm286, %v1424
        %1523 = vst.msk [vmem:[%s244 + $0xd0] sm:$0xff] %vm286, %v1425
        %1524 = vst.msk [vmem:[%s244 + $0xd8] sm:$0xff] %vm286, %v1426
        %1525 = vst.msk [vmem:[%s244 + $0xe0] sm:$0xff] %vm286, %v1427
        %1526 = vst.msk [vmem:[%s244 + $0xe8] sm:$0xff] %vm286, %v1428
        %1527 = vst.msk [vmem:[%s244 + $0xf0] sm:$0xff] %vm286, %v1429
        %1528 = vst.msk [vmem:[%s244 + $0xf8] sm:$0xff] %vm286, %v1430
        %s1529 = sand.u32 %s118, 1
        %s1530 = scalar_lea.sflag [#allocation4], %s1529
        %s1531 = sand.u32 %s118, 1
        %s1532 = smul.addr %s1531, 16
        %s1533 = scalar_lea.vmem [#allocation3], %s1532
        %s1534 = smul.u32 2, %s21
        %p1535 = scmp.lt.s32.totalorder %s1534, 3
        %s1536 = scalar_select %p1535, %s1534, 3
        %s1537 = smul.addr %s1536, 16
        %s1538 = smul.addr %s1537, 8
        %s1539 = scalar_lea.vmem %s5, %s1538
        // Predicated region
        $region37: #{semantic_attention.1} parent=35 // pred_check
          %p1540 = pneg %p128
        $region38: #{semantic_attention.1} parent=35 // pred_check_branch
          %1542 = sbr.rel (%p1540) target = $region40
        $region39: #{semantic_attention.1} parent=35 // pred_region
          %s1543 = smul.u32 2, %s21
          %1545 = vsyncadd %s1530, 0
          %s1546 = smul.addr %s1543, 8
          %s1547 = scalar_lea.hbm %s4, %s1546
          %s1548 = sshll.u32 %s1533, 4
          %s1549 = int_to_ptr.vmem [resolvable:$true] %s1548
          %s1550 = sshll.u32 %s1547, 4
          %s1551 = int_to_ptr.hbm [resolvable:$true] %s1550
          %1556 = dma.vmem_to_hbm [thread:$0]  %s1549, 256, %s1551, %s1530, 128, 128, 8
        $region40: #{semantic_attention.1} parent=35 // pred_fallthru
          _
        // Predicated region
        $region41: #{semantic_attention.1} parent=35 // pred_check
          %p1557 = pneg %p154
        $region42: #{semantic_attention.1} parent=35 // pred_check_branch
          %1559 = sbr.rel (%p1557) target = $region44
        $region43: #{semantic_attention.1} parent=35 // pred_region
          %s1560 = smul.u32 2, %s21
        $region44: #{semantic_attention.1} parent=35 // pred_fallthru
          _
      $region36: #{semantic_attention.1} parent=5 // pred_fallthru
        _
      %p1561 = scmp.le.s32.totalorder 2, %s16
      // Predicated region
      $region45: #{semantic_attention.1} parent=5 // pred_check
        %p1562 = pneg %p1561
      $region46: #{semantic_attention.1} parent=5 // pred_check_branch
        %1564 = sbr.rel (%p1562) target = $region48
      $region47: #{semantic_attention.1} parent=5 // pred_region
        %s1565 = ssub.s32 %s16, 2
        // Predicated region
        $region49: #{semantic_attention.1} parent=47 // pred_check
          %p1566 = pneg %p134
        $region50: #{semantic_attention.1} parent=47 // pred_check_branch
          %1568 = sbr.rel (%p1566) target = $region52
        $region51: #{semantic_attention.1} parent=47 // pred_region
          %s1569 = sand.u32 %s119, 1
          %s1570 = scalar_lea.sflag [#allocation4], %s1569
          %s1571 = sand.u32 %s119, 1
          %s1572 = smul.addr %s1571, 16
          %s1573 = scalar_lea.vmem [#allocation3], %s1572
          %1575 = dma.done %s1570, 256
        $region52: #{semantic_attention.1} parent=47 // pred_fallthru
          _
        // Predicated region
        $region53: #{semantic_attention.1} parent=47 // pred_check
          %p1576 = pneg %p160
        $region54: #{semantic_attention.1} parent=47 // pred_check_branch
          %1578 = sbr.rel (%p1576) target = $region56
        $region55: #{semantic_attention.1} parent=47 // pred_region
          %s1579 = smul.u32 2, %s22
          %p1580 = scmp.lt.s32.totalorder %s1579, 3
          %s1581 = scalar_select %p1580, %s1579, 3
          %s1582 = smul.addr %s1581, 16
          %s1583 = smul.addr %s1582, 8
          %s1584 = scalar_lea.vmem %s5, %s1583
        $region56: #{semantic_attention.1} parent=47 // pred_fallthru
          _
      $region48: #{semantic_attention.1} parent=5 // pred_fallthru
        _
    $region6: #{semantic_attention.1} parent=1 // loop_footer
      %s20 = sadd.s32 1, %s16
    $region7: #{semantic_attention.1} parent=1 // loop_footer_branch
      %15 = sbr.rel target = $region3
    $region8: #{semantic_attention.1} parent=1 // loop_exit
      _
    %1585 = vsyncpa [#allocation4], 1
    %s1586 = scalar_lea.sflag [#allocation4], 1
    %1587 = vsyncpa %s1586, 1

</llo_original>
